<compile_context>
chip_gen: v5e
topology: v5e:2x2
jax: 0.10.0
libtpu: 0.0.40
codegen_flags: <defaults>
</compile_context>

<pallas_src>
import functools

import jax
import jax.numpy as jnp
from jax.experimental import pallas as pl


def _round_up(x, m):
    return ((x + m - 1) // m) * m


# --------------------------------------------------------------------------
# Fused Pallas kernel: one-hot embed+proj -> wavefront 2-layer LSTM -> Linear
# --------------------------------------------------------------------------
def _qa_fused_kernel(ids_ref, w_ref, out_ref, *,
                     seq_len, batch_pad, hidden, vocab_pad, offs):
    T, Bp, H, Vp = seq_len, batch_pad, hidden, vocab_pad
    o_tab0, o_whh0, o_wih1, o_whh1, o_b1, o_fcw, o_fcb = offs

    # ---- Embedding + layer-0 input projection + bias as ONE one-hot matmul
    #      against the pre-folded (Vp, 4H) table (exact). ----
    ids = ids_ref[...]                                              # (T*Bp, 1) i32
    vocab = jax.lax.broadcasted_iota(jnp.int32, (T * Bp, Vp), 1)
    one_hot = (vocab == ids).astype(jnp.float32)                    # (T*Bp, Vp)
    table0 = w_ref[pl.ds(o_tab0, Vp), :]                            # (Vp, Lw)
    xg0 = jnp.dot(one_hot, table0,
                  preferred_element_type=jnp.float32)               # (T*Bp, Lw)

    # Static slices into the packed weight slab (zero-cost views -> loads).
    whh0 = w_ref[pl.ds(o_whh0, H), :]                               # (H, Lw)
    wih1 = w_ref[pl.ds(o_wih1, H), :]                               # (H, Lw)
    whh1 = w_ref[pl.ds(o_whh1, H), :]                               # (H, Lw)
    b1 = w_ref[pl.ds(o_b1, 1), :]                                   # (1, Lw)
    fcw = w_ref[pl.ds(o_fcw, H), :]                                 # (H, Lw)
    fcb = w_ref[pl.ds(o_fcb, 1), :]                                 # (1, Lw)

    def cell(gates, c):
        # g-lanes are pre-scaled by 2 in the packed weights, so one full-width
        # sigmoid covers all four gates; tanh(g) = 2*sigmoid(2g) - 1.
        s = jax.nn.sigmoid(gates)
        i = s[:, 0 * H:1 * H]
        f = s[:, 1 * H:2 * H]
        g = s[:, 2 * H:3 * H] * 2.0 - 1.0
        o = s[:, 3 * H:4 * H]
        c_new = f * c + i * g
        h_new = o * jnp.tanh(c_new)
        return h_new, c_new

    h0 = jnp.zeros((Bp, H), jnp.float32)
    c0 = jnp.zeros((Bp, H), jnp.float32)
    h1 = jnp.zeros((Bp, H), jnp.float32)
    c1 = jnp.zeros((Bp, H), jnp.float32)

    # Wavefront-fused two-layer recurrence: layer-1 step t uses h0_t directly,
    # so layer-1's MXU/EUP work can hide under layer-0 step t+1.
    for t in range(T):                         # static unroll (T small & fixed)
        gates0 = xg0[t * Bp:(t + 1) * Bp, :] + jnp.dot(
            h0, whh0, preferred_element_type=jnp.float32)
        h0, c0 = cell(gates0, c0)

        gates1 = (jnp.dot(h0, wih1, preferred_element_type=jnp.float32)
                  + jnp.dot(h1, whh1, preferred_element_type=jnp.float32)
                  + b1)
        h1, c1 = cell(gates1, c1)

    # ---- Final Linear on hidden[-1]; lane-dense unmasked store. ----
    out_ref[...] = jnp.dot(h1, fcw, preferred_element_type=jnp.float32) + fcb


# --------------------------------------------------------------------------
# One-time parameter packing (call once at parameter-load time, not per step)
# --------------------------------------------------------------------------
def pack_qa_params(params):
    emb = params["embedding"].astype(jnp.float32)        # (V, E)
    w_ih0 = params["w_ih_l0_t"].astype(jnp.float32)      # (E, 4H)
    w_hh0 = params["w_hh_l0_t"].astype(jnp.float32)      # (H, 4H)
    b0 = params["b_l0"].astype(jnp.float32)              # (1, 4H)
    w_ih1 = params["w_ih_l1_t"].astype(jnp.float32)      # (H, 4H)
    w_hh1 = params["w_hh_l1_t"].astype(jnp.float32)      # (H, 4H)
    b1 = params["b_l1"].astype(jnp.float32)              # (1, 4H)
    fc_w = params["fc_w_t"].astype(jnp.float32)          # (H, O)
    fc_b = params["fc_b"].astype(jnp.float32)            # (1, O)

    V, _ = emb.shape
    H = w_hh0.shape[0]
    G = 4 * H
    O = fc_w.shape[1]
    Vp = _round_up(V, 128)
    Lw = max(_round_up(G, 128), _round_up(O, 128))       # lane width of slab

    # Fold embedding + W_ih0 + b0 into one lookup->gates table (exact in f32).
    table0 = emb @ w_ih0 + b0                             # (V, 4H)

    # Fold the tanh-gate 2x pre-scale into the g-lane columns of every
    # gate-producing weight (exact: x2 in f32).
    def scale_g(w):
        return w.at[:, 2 * H:3 * H].multiply(2.0)

    table0 = scale_g(table0)
    w_hh0 = scale_g(w_hh0)
    w_ih1 = scale_g(w_ih1)
    w_hh1 = scale_g(w_hh1)
    b1 = scale_g(b1)

    Hp = _round_up(H, 8)
    o_tab0 = 0
    o_whh0 = o_tab0 + Vp
    o_wih1 = o_whh0 + Hp
    o_whh1 = o_wih1 + Hp
    o_b1 = o_whh1 + Hp
    o_fcw = o_b1 + 8
    o_fcb = o_fcw + Hp
    rows = o_fcb + 8

    slab = jnp.zeros((rows, Lw), jnp.float32)
    slab = slab.at[o_tab0:o_tab0 + V, 0:G].set(table0)
    slab = slab.at[o_whh0:o_whh0 + H, 0:G].set(w_hh0)
    slab = slab.at[o_wih1:o_wih1 + H, 0:G].set(w_ih1)
    slab = slab.at[o_whh1:o_whh1 + H, 0:G].set(w_hh1)
    slab = slab.at[o_b1:o_b1 + 1, 0:G].set(b1)
    slab = slab.at[o_fcw:o_fcw + H, 0:O].set(fc_w)
    slab = slab.at[o_fcb:o_fcb + 1, 0:O].set(fc_b)

    meta = dict(H=H, O=O, Vp=Vp, Lw=Lw, rows=rows,
                offs=(o_tab0, o_whh0, o_wih1, o_whh1, o_b1, o_fcw, o_fcb))
    return slab, meta


# --------------------------------------------------------------------------
# Forward-pass factory (static shapes baked in; single ungridded pallas_call)
# --------------------------------------------------------------------------
def make_qa_forward(meta, seq_len, batch):
    H, O, Vp, Lw, rows = meta["H"], meta["O"], meta["Vp"], meta["Lw"], meta["rows"]
    offs = meta["offs"]
    T, B = seq_len, batch
    Bp = _round_up(B, 8)               # pad batch to one full sublane group

    kernel = functools.partial(_qa_fused_kernel, seq_len=T, batch_pad=Bp,
                               hidden=H, vocab_pad=Vp, offs=offs)
    # Footprint ~0.2 MiB: no grid needed.  (If batch ever grows, add a leading
    # batch-block grid axis with dimension_semantics=("parallel",) for v7x.)
    call = pl.pallas_call(
        kernel,
        out_shape=jax.ShapeDtypeStruct((Bp, Lw), jnp.float32),
        in_specs=[
            pl.BlockSpec((T * Bp, 1), lambda: (0, 0)),   # token ids (time-major)
            pl.BlockSpec((rows, Lw), lambda: (0, 0)),    # packed weight slab
        ],
        out_specs=pl.BlockSpec((Bp, Lw), lambda: (0, 0)),
    )

    @jax.jit
    def forward(text, slab):
        ids_tm = jnp.zeros((T, Bp), jnp.int32).at[:, :B].set(
            text.T.astype(jnp.int32))
        out_full = call(ids_tm.reshape(T * Bp, 1), slab)
        return out_full[:B, :O]

    return forward


# --------------------------------------------------------------------------
# Pure-JAX reference (sanity check)
# --------------------------------------------------------------------------
def lstm_layer_ref(x_tbe, w_ih_t, w_hh_t, bias):
    H = w_hh_t.shape[0]

    def step(carry, x_t):
        h, c = carry
        gates = x_t @ w_ih_t + h @ w_hh_t + bias[0]
        i = jax.nn.sigmoid(gates[:, 0 * H:1 * H])
        f = jax.nn.sigmoid(gates[:, 1 * H:2 * H])
        g = jnp.tanh(gates[:, 2 * H:3 * H])
        o = jax.nn.sigmoid(gates[:, 3 * H:4 * H])
        c = f * c + i * g
        h = o * jnp.tanh(c)
        return (h, c), h

    B = x_tbe.shape[1]
    init = (jnp.zeros((B, H), jnp.float32), jnp.zeros((B, H), jnp.float32))
    (_, _), hs = jax.lax.scan(step, init, x_tbe)
    return hs


def qa_model_ref(text, params):
    embedded = params["embedding"][text]
    x = jnp.transpose(embedded, (1, 0, 2)).astype(jnp.float32)
    h_seq = lstm_layer_ref(x, params["w_ih_l0_t"], params["w_hh_l0_t"], params["b_l0"])
    h_seq = lstm_layer_ref(h_seq, params["w_ih_l1_t"], params["w_hh_l1_t"], params["b_l1"])
    return h_seq[-1] @ params["fc_w_t"] + params["fc_b"][0]


# --------------------------------------------------------------------------
# Main
# --------------------------------------------------------------------------
if __name__ == "__main__":
    # Model hyper-params (small, consistent with QAModel.__init__)
    VOCAB = 50
    E = 32          # embedding_dim
    H = 32          # hidden_dim
    O = 4           # output_dim
    B = 2           # batch
    T = 8           # sequence length

    key = jax.random.PRNGKey(0)
    keys = jax.random.split(key, 12)
    scale = 1.0 / jnp.sqrt(H)

    def u(k, shape):
        return jax.random.uniform(k, shape, jnp.float32, -scale, scale)

    params = {
        "embedding": jax.random.normal(keys[0], (VOCAB, E), jnp.float32),
        # layer 0 (input E) — stored pre-transposed: (in, 4H), gate order [i,f,g,o]
        "w_ih_l0_t": u(keys[1], (E, 4 * H)),
        "w_hh_l0_t": u(keys[2], (H, 4 * H)),
        "b_l0": (u(keys[3], (1, 4 * H)) + u(keys[4], (1, 4 * H))),  # b_ih + b_hh
        # layer 1 (input H)
        "w_ih_l1_t": u(keys[5], (H, 4 * H)),
        "w_hh_l1_t": u(keys[6], (H, 4 * H)),
        "b_l1": (u(keys[7], (1, 4 * H)) + u(keys[8], (1, 4 * H))),
        # fc: Linear(H, O), stored pre-transposed (H, O)
        "fc_w_t": u(keys[9], (H, O)),
        "fc_b": u(keys[10], (1, O)),
    }

    text = jax.random.randint(keys[11], (B, T), 0, VOCAB, dtype=jnp.int32)

    # Pack once at parameter-load time, then reuse for every forward call.
    slab, meta = pack_qa_params(params)
    slab = jax.block_until_ready(slab)

    qa_forward = make_qa_forward(meta, seq_len=T, batch=B)
    out = qa_forward(text, slab)
    out = jax.block_until_ready(out)

    ref = qa_model_ref(text, params)
    assert out.shape == (B, O), out.shape
    assert jnp.allclose(out, ref, atol=1e-4, rtol=1e-4), (
        f"mismatch: max err {jnp.max(jnp.abs(out - ref))}")

    print("KERNEL_OK")
</pallas_src>

<mosaic_0001>
module attributes {stable_mosaic.version = 11 : i64} {
  func.func @_qa_fused_kernel(%arg0: memref<64x1xi32, #tpu.memory_space<vmem>>, %arg1: memref<272x128xf32, #tpu.memory_space<vmem>>, %arg2: memref<8x128xf32, #tpu.memory_space<vmem>>) attributes {dimension_semantics = [], scalar_prefetch = 0 : i64, scratch_operands = 0 : i64, tpu.core_type = #tpu.core_type<tc>} {
    %c0 = arith.constant 0 : index
    %c0_0 = arith.constant 0 : index
    %0 = vector.load %arg0[%c0, %c0_0] : memref<64x1xi32, #tpu.memory_space<vmem>>, vector<64x1xi32>
    %1 = tpu.iota {dimensions = array<i32: 1>} : vector<64x128xi32>
    %2 = vector.broadcast %0 : vector<64x1xi32> to vector<64x128xi32>
    %3 = arith.cmpi eq, %1, %2 : vector<64x128xi32>
    %4 = arith.extui %3 : vector<64x128xi1> to vector<64x128xi32>
    %5 = arith.sitofp %4 : vector<64x128xi32> to vector<64x128xf32>
    %c0_1 = arith.constant 0 : index
    %c0_2 = arith.constant 0 : index
    %6 = vector.load %arg1[%c0_1, %c0_2] : memref<272x128xf32, #tpu.memory_space<vmem>>, vector<128x128xf32>
    %cst = arith.constant dense<0.000000e+00> : vector<64x128xf32>
    %7 = tpu.matmul %5, %6, %cst {dimension_numbers = #tpu.dot_dimension_numbers<[1], [0], [0], [1], [0, 0, 1, 1], [], []>} : vector<64x128xf32>, vector<128x128xf32>, vector<64x128xf32> -> vector<64x128xf32>
    %c128 = arith.constant 128 : index
    %c0_3 = arith.constant 0 : index
    %8 = vector.load %arg1[%c128, %c0_3] : memref<272x128xf32, #tpu.memory_space<vmem>>, vector<32x128xf32>
    %c160 = arith.constant 160 : index
    %c0_4 = arith.constant 0 : index
    %9 = vector.load %arg1[%c160, %c0_4] : memref<272x128xf32, #tpu.memory_space<vmem>>, vector<32x128xf32>
    %c192 = arith.constant 192 : index
    %c0_5 = arith.constant 0 : index
    %10 = vector.load %arg1[%c192, %c0_5] : memref<272x128xf32, #tpu.memory_space<vmem>>, vector<32x128xf32>
    %c224 = arith.constant 224 : index
    %c0_6 = arith.constant 0 : index
    %11 = vector.load %arg1[%c224, %c0_6] : memref<272x128xf32, #tpu.memory_space<vmem>>, vector<1x128xf32>
    %c232 = arith.constant 232 : index
    %c0_7 = arith.constant 0 : index
    %12 = vector.load %arg1[%c232, %c0_7] : memref<272x128xf32, #tpu.memory_space<vmem>>, vector<32x128xf32>
    %c264 = arith.constant 264 : index
    %c0_8 = arith.constant 0 : index
    %13 = vector.load %arg1[%c264, %c0_8] : memref<272x128xf32, #tpu.memory_space<vmem>>, vector<1x128xf32>
    %cst_9 = arith.constant 0.000000e+00 : f32
    %14 = vector.broadcast %cst_9 : f32 to vector<8x32xf32>
    %cst_10 = arith.constant 0.000000e+00 : f32
    %15 = vector.broadcast %cst_10 : f32 to vector<8x32xf32>
    %cst_11 = arith.constant 0.000000e+00 : f32
    %16 = vector.broadcast %cst_11 : f32 to vector<8x32xf32>
    %cst_12 = arith.constant 0.000000e+00 : f32
    %17 = vector.broadcast %cst_12 : f32 to vector<8x32xf32>
    %18 = vector.extract_strided_slice %7 {offsets = [0, 0], sizes = [8, 128], strides = [1, 1]} : vector<64x128xf32> to vector<8x128xf32>
    %cst_13 = arith.constant dense<0.000000e+00> : vector<8x128xf32>
    %19 = tpu.matmul %14, %8, %cst_13 {dimension_numbers = #tpu.dot_dimension_numbers<[1], [0], [0], [1], [0, 0, 1, 1], [], []>} : vector<8x32xf32>, vector<32x128xf32>, vector<8x128xf32> -> vector<8x128xf32>
    %20 = arith.addf %18, %19 : vector<8x128xf32>
    %21 = arith.negf %20 : vector<8x128xf32>
    %22 = math.exp %21 : vector<8x128xf32>
    %cst_14 = arith.constant 1.000000e+00 : f32
    %23 = vector.broadcast %cst_14 : f32 to vector<8x128xf32>
    %24 = arith.addf %23, %22 : vector<8x128xf32>
    %25 = arith.divf %23, %24 : vector<8x128xf32>
    %26 = vector.extract_strided_slice %25 {offsets = [0, 0], sizes = [8, 32], strides = [1, 1]} : vector<8x128xf32> to vector<8x32xf32>
    %27 = vector.extract_strided_slice %25 {offsets = [0, 32], sizes = [8, 32], strides = [1, 1]} : vector<8x128xf32> to vector<8x32xf32>
    %28 = vector.extract_strided_slice %25 {offsets = [0, 64], sizes = [8, 32], strides = [1, 1]} : vector<8x128xf32> to vector<8x32xf32>
    %cst_15 = arith.constant 2.000000e+00 : f32
    %29 = vector.broadcast %cst_15 : f32 to vector<8x32xf32>
    %30 = arith.mulf %28, %29 : vector<8x32xf32>
    %cst_16 = arith.constant 1.000000e+00 : f32
    %31 = vector.broadcast %cst_16 : f32 to vector<8x32xf32>
    %32 = arith.subf %30, %31 : vector<8x32xf32>
    %33 = vector.extract_strided_slice %25 {offsets = [0, 96], sizes = [8, 32], strides = [1, 1]} : vector<8x128xf32> to vector<8x32xf32>
    %34 = arith.mulf %27, %15 : vector<8x32xf32>
    %35 = arith.mulf %26, %32 : vector<8x32xf32>
    %36 = arith.addf %34, %35 : vector<8x32xf32>
    %37 = math.tanh %36 : vector<8x32xf32>
    %38 = arith.mulf %33, %37 : vector<8x32xf32>
    %cst_17 = arith.constant dense<0.000000e+00> : vector<8x128xf32>
    %39 = tpu.matmul %38, %9, %cst_17 {dimension_numbers = #tpu.dot_dimension_numbers<[1], [0], [0], [1], [0, 0, 1, 1], [], []>} : vector<8x32xf32>, vector<32x128xf32>, vector<8x128xf32> -> vector<8x128xf32>
    %cst_18 = arith.constant dense<0.000000e+00> : vector<8x128xf32>
    %40 = tpu.matmul %16, %10, %cst_18 {dimension_numbers = #tpu.dot_dimension_numbers<[1], [0], [0], [1], [0, 0, 1, 1], [], []>} : vector<8x32xf32>, vector<32x128xf32>, vector<8x128xf32> -> vector<8x128xf32>
    %41 = arith.addf %39, %40 : vector<8x128xf32>
    %42 = vector.broadcast %11 : vector<1x128xf32> to vector<8x128xf32>
    %43 = arith.addf %41, %42 : vector<8x128xf32>
    %44 = arith.negf %43 : vector<8x128xf32>
    %45 = math.exp %44 : vector<8x128xf32>
    %cst_19 = arith.constant 1.000000e+00 : f32
    %46 = vector.broadcast %cst_19 : f32 to vector<8x128xf32>
    %47 = arith.addf %46, %45 : vector<8x128xf32>
    %48 = arith.divf %46, %47 : vector<8x128xf32>
    %49 = vector.extract_strided_slice %48 {offsets = [0, 0], sizes = [8, 32], strides = [1, 1]} : vector<8x128xf32> to vector<8x32xf32>
    %50 = vector.extract_strided_slice %48 {offsets = [0, 32], sizes = [8, 32], strides = [1, 1]} : vector<8x128xf32> to vector<8x32xf32>
    %51 = vector.extract_strided_slice %48 {offsets = [0, 64], sizes = [8, 32], strides = [1, 1]} : vector<8x128xf32> to vector<8x32xf32>
    %cst_20 = arith.constant 2.000000e+00 : f32
    %52 = vector.broadcast %cst_20 : f32 to vector<8x32xf32>
    %53 = arith.mulf %51, %52 : vector<8x32xf32>
    %cst_21 = arith.constant 1.000000e+00 : f32
    %54 = vector.broadcast %cst_21 : f32 to vector<8x32xf32>
    %55 = arith.subf %53, %54 : vector<8x32xf32>
    %56 = vector.extract_strided_slice %48 {offsets = [0, 96], sizes = [8, 32], strides = [1, 1]} : vector<8x128xf32> to vector<8x32xf32>
    %57 = arith.mulf %50, %17 : vector<8x32xf32>
    %58 = arith.mulf %49, %55 : vector<8x32xf32>
    %59 = arith.addf %57, %58 : vector<8x32xf32>
    %60 = math.tanh %59 : vector<8x32xf32>
    %61 = arith.mulf %56, %60 : vector<8x32xf32>
    %62 = vector.extract_strided_slice %7 {offsets = [8, 0], sizes = [8, 128], strides = [1, 1]} : vector<64x128xf32> to vector<8x128xf32>
    %cst_22 = arith.constant dense<0.000000e+00> : vector<8x128xf32>
    %63 = tpu.matmul %38, %8, %cst_22 {dimension_numbers = #tpu.dot_dimension_numbers<[1], [0], [0], [1], [0, 0, 1, 1], [], []>} : vector<8x32xf32>, vector<32x128xf32>, vector<8x128xf32> -> vector<8x128xf32>
    %64 = arith.addf %62, %63 : vector<8x128xf32>
    %65 = arith.negf %64 : vector<8x128xf32>
    %66 = math.exp %65 : vector<8x128xf32>
    %cst_23 = arith.constant 1.000000e+00 : f32
    %67 = vector.broadcast %cst_23 : f32 to vector<8x128xf32>
    %68 = arith.addf %67, %66 : vector<8x128xf32>
    %69 = arith.divf %67, %68 : vector<8x128xf32>
    %70 = vector.extract_strided_slice %69 {offsets = [0, 0], sizes = [8, 32], strides = [1, 1]} : vector<8x128xf32> to vector<8x32xf32>
    %71 = vector.extract_strided_slice %69 {offsets = [0, 32], sizes = [8, 32], strides = [1, 1]} : vector<8x128xf32> to vector<8x32xf32>
    %72 = vector.extract_strided_slice %69 {offsets = [0, 64], sizes = [8, 32], strides = [1, 1]} : vector<8x128xf32> to vector<8x32xf32>
    %cst_24 = arith.constant 2.000000e+00 : f32
    %73 = vector.broadcast %cst_24 : f32 to vector<8x32xf32>
    %74 = arith.mulf %72, %73 : vector<8x32xf32>
    %cst_25 = arith.constant 1.000000e+00 : f32
    %75 = vector.broadcast %cst_25 : f32 to vector<8x32xf32>
    %76 = arith.subf %74, %75 : vector<8x32xf32>
    %77 = vector.extract_strided_slice %69 {offsets = [0, 96], sizes = [8, 32], strides = [1, 1]} : vector<8x128xf32> to vector<8x32xf32>
    %78 = arith.mulf %71, %36 : vector<8x32xf32>
    %79 = arith.mulf %70, %76 : vector<8x32xf32>
    %80 = arith.addf %78, %79 : vector<8x32xf32>
    %81 = math.tanh %80 : vector<8x32xf32>
    %82 = arith.mulf %77, %81 : vector<8x32xf32>
    %cst_26 = arith.constant dense<0.000000e+00> : vector<8x128xf32>
    %83 = tpu.matmul %82, %9, %cst_26 {dimension_numbers = #tpu.dot_dimension_numbers<[1], [0], [0], [1], [0, 0, 1, 1], [], []>} : vector<8x32xf32>, vector<32x128xf32>, vector<8x128xf32> -> vector<8x128xf32>
    %cst_27 = arith.constant dense<0.000000e+00> : vector<8x128xf32>
    %84 = tpu.matmul %61, %10, %cst_27 {dimension_numbers = #tpu.dot_dimension_numbers<[1], [0], [0], [1], [0, 0, 1, 1], [], []>} : vector<8x32xf32>, vector<32x128xf32>, vector<8x128xf32> -> vector<8x128xf32>
    %85 = arith.addf %83, %84 : vector<8x128xf32>
    %86 = vector.broadcast %11 : vector<1x128xf32> to vector<8x128xf32>
    %87 = arith.addf %85, %86 : vector<8x128xf32>
    %88 = arith.negf %87 : vector<8x128xf32>
    %89 = math.exp %88 : vector<8x128xf32>
    %cst_28 = arith.constant 1.000000e+00 : f32
    %90 = vector.broadcast %cst_28 : f32 to vector<8x128xf32>
    %91 = arith.addf %90, %89 : vector<8x128xf32>
    %92 = arith.divf %90, %91 : vector<8x128xf32>
    %93 = vector.extract_strided_slice %92 {offsets = [0, 0], sizes = [8, 32], strides = [1, 1]} : vector<8x128xf32> to vector<8x32xf32>
    %94 = vector.extract_strided_slice %92 {offsets = [0, 32], sizes = [8, 32], strides = [1, 1]} : vector<8x128xf32> to vector<8x32xf32>
    %95 = vector.extract_strided_slice %92 {offsets = [0, 64], sizes = [8, 32], strides = [1, 1]} : vector<8x128xf32> to vector<8x32xf32>
    %cst_29 = arith.constant 2.000000e+00 : f32
    %96 = vector.broadcast %cst_29 : f32 to vector<8x32xf32>
    %97 = arith.mulf %95, %96 : vector<8x32xf32>
    %cst_30 = arith.constant 1.000000e+00 : f32
    %98 = vector.broadcast %cst_30 : f32 to vector<8x32xf32>
    %99 = arith.subf %97, %98 : vector<8x32xf32>
    %100 = vector.extract_strided_slice %92 {offsets = [0, 96], sizes = [8, 32], strides = [1, 1]} : vector<8x128xf32> to vector<8x32xf32>
    %101 = arith.mulf %94, %59 : vector<8x32xf32>
    %102 = arith.mulf %93, %99 : vector<8x32xf32>
    %103 = arith.addf %101, %102 : vector<8x32xf32>
    %104 = math.tanh %103 : vector<8x32xf32>
    %105 = arith.mulf %100, %104 : vector<8x32xf32>
    %106 = vector.extract_strided_slice %7 {offsets = [16, 0], sizes = [8, 128], strides = [1, 1]} : vector<64x128xf32> to vector<8x128xf32>
    %cst_31 = arith.constant dense<0.000000e+00> : vector<8x128xf32>
    %107 = tpu.matmul %82, %8, %cst_31 {dimension_numbers = #tpu.dot_dimension_numbers<[1], [0], [0], [1], [0, 0, 1, 1], [], []>} : vector<8x32xf32>, vector<32x128xf32>, vector<8x128xf32> -> vector<8x128xf32>
    %108 = arith.addf %106, %107 : vector<8x128xf32>
    %109 = arith.negf %108 : vector<8x128xf32>
    %110 = math.exp %109 : vector<8x128xf32>
    %cst_32 = arith.constant 1.000000e+00 : f32
    %111 = vector.broadcast %cst_32 : f32 to vector<8x128xf32>
    %112 = arith.addf %111, %110 : vector<8x128xf32>
    %113 = arith.divf %111, %112 : vector<8x128xf32>
    %114 = vector.extract_strided_slice %113 {offsets = [0, 0], sizes = [8, 32], strides = [1, 1]} : vector<8x128xf32> to vector<8x32xf32>
    %115 = vector.extract_strided_slice %113 {offsets = [0, 32], sizes = [8, 32], strides = [1, 1]} : vector<8x128xf32> to vector<8x32xf32>
    %116 = vector.extract_strided_slice %113 {offsets = [0, 64], sizes = [8, 32], strides = [1, 1]} : vector<8x128xf32> to vector<8x32xf32>
    %cst_33 = arith.constant 2.000000e+00 : f32
    %117 = vector.broadcast %cst_33 : f32 to vector<8x32xf32>
    %118 = arith.mulf %116, %117 : vector<8x32xf32>
    %cst_34 = arith.constant 1.000000e+00 : f32
    %119 = vector.broadcast %cst_34 : f32 to vector<8x32xf32>
    %120 = arith.subf %118, %119 : vector<8x32xf32>
    %121 = vector.extract_strided_slice %113 {offsets = [0, 96], sizes = [8, 32], strides = [1, 1]} : vector<8x128xf32> to vector<8x32xf32>
    %122 = arith.mulf %115, %80 : vector<8x32xf32>
    %123 = arith.mulf %114, %120 : vector<8x32xf32>
    %124 = arith.addf %122, %123 : vector<8x32xf32>
    %125 = math.tanh %124 : vector<8x32xf32>
    %126 = arith.mulf %121, %125 : vector<8x32xf32>
    %cst_35 = arith.constant dense<0.000000e+00> : vector<8x128xf32>
    %127 = tpu.matmul %126, %9, %cst_35 {dimension_numbers = #tpu.dot_dimension_numbers<[1], [0], [0], [1], [0, 0, 1, 1], [], []>} : vector<8x32xf32>, vector<32x128xf32>, vector<8x128xf32> -> vector<8x128xf32>
    %cst_36 = arith.constant dense<0.000000e+00> : vector<8x128xf32>
    %128 = tpu.matmul %105, %10, %cst_36 {dimension_numbers = #tpu.dot_dimension_numbers<[1], [0], [0], [1], [0, 0, 1, 1], [], []>} : vector<8x32xf32>, vector<32x128xf32>, vector<8x128xf32> -> vector<8x128xf32>
    %129 = arith.addf %127, %128 : vector<8x128xf32>
    %130 = vector.broadcast %11 : vector<1x128xf32> to vector<8x128xf32>
    %131 = arith.addf %129, %130 : vector<8x128xf32>
    %132 = arith.negf %131 : vector<8x128xf32>
    %133 = math.exp %132 : vector<8x128xf32>
    %cst_37 = arith.constant 1.000000e+00 : f32
    %134 = vector.broadcast %cst_37 : f32 to vector<8x128xf32>
    %135 = arith.addf %134, %133 : vector<8x128xf32>
    %136 = arith.divf %134, %135 : vector<8x128xf32>
    %137 = vector.extract_strided_slice %136 {offsets = [0, 0], sizes = [8, 32], strides = [1, 1]} : vector<8x128xf32> to vector<8x32xf32>
    %138 = vector.extract_strided_slice %136 {offsets = [0, 32], sizes = [8, 32], strides = [1, 1]} : vector<8x128xf32> to vector<8x32xf32>
    %139 = vector.extract_strided_slice %136 {offsets = [0, 64], sizes = [8, 32], strides = [1, 1]} : vector<8x128xf32> to vector<8x32xf32>
    %cst_38 = arith.constant 2.000000e+00 : f32
    %140 = vector.broadcast %cst_38 : f32 to vector<8x32xf32>
    %141 = arith.mulf %139, %140 : vector<8x32xf32>
    %cst_39 = arith.constant 1.000000e+00 : f32
    %142 = vector.broadcast %cst_39 : f32 to vector<8x32xf32>
    %143 = arith.subf %141, %142 : vector<8x32xf32>
    %144 = vector.extract_strided_slice %136 {offsets = [0, 96], sizes = [8, 32], strides = [1, 1]} : vector<8x128xf32> to vector<8x32xf32>
    %145 = arith.mulf %138, %103 : vector<8x32xf32>
    %146 = arith.mulf %137, %143 : vector<8x32xf32>
    %147 = arith.addf %145, %146 : vector<8x32xf32>
    %148 = math.tanh %147 : vector<8x32xf32>
    %149 = arith.mulf %144, %148 : vector<8x32xf32>
    %150 = vector.extract_strided_slice %7 {offsets = [24, 0], sizes = [8, 128], strides = [1, 1]} : vector<64x128xf32> to vector<8x128xf32>
    %cst_40 = arith.constant dense<0.000000e+00> : vector<8x128xf32>
    %151 = tpu.matmul %126, %8, %cst_40 {dimension_numbers = #tpu.dot_dimension_numbers<[1], [0], [0], [1], [0, 0, 1, 1], [], []>} : vector<8x32xf32>, vector<32x128xf32>, vector<8x128xf32> -> vector<8x128xf32>
    %152 = arith.addf %150, %151 : vector<8x128xf32>
    %153 = arith.negf %152 : vector<8x128xf32>
    %154 = math.exp %153 : vector<8x128xf32>
    %cst_41 = arith.constant 1.000000e+00 : f32
    %155 = vector.broadcast %cst_41 : f32 to vector<8x128xf32>
    %156 = arith.addf %155, %154 : vector<8x128xf32>
    %157 = arith.divf %155, %156 : vector<8x128xf32>
    %158 = vector.extract_strided_slice %157 {offsets = [0, 0], sizes = [8, 32], strides = [1, 1]} : vector<8x128xf32> to vector<8x32xf32>
    %159 = vector.extract_strided_slice %157 {offsets = [0, 32], sizes = [8, 32], strides = [1, 1]} : vector<8x128xf32> to vector<8x32xf32>
    %160 = vector.extract_strided_slice %157 {offsets = [0, 64], sizes = [8, 32], strides = [1, 1]} : vector<8x128xf32> to vector<8x32xf32>
    %cst_42 = arith.constant 2.000000e+00 : f32
    %161 = vector.broadcast %cst_42 : f32 to vector<8x32xf32>
    %162 = arith.mulf %160, %161 : vector<8x32xf32>
    %cst_43 = arith.constant 1.000000e+00 : f32
    %163 = vector.broadcast %cst_43 : f32 to vector<8x32xf32>
    %164 = arith.subf %162, %163 : vector<8x32xf32>
    %165 = vector.extract_strided_slice %157 {offsets = [0, 96], sizes = [8, 32], strides = [1, 1]} : vector<8x128xf32> to vector<8x32xf32>
    %166 = arith.mulf %159, %124 : vector<8x32xf32>
    %167 = arith.mulf %158, %164 : vector<8x32xf32>
    %168 = arith.addf %166, %167 : vector<8x32xf32>
    %169 = math.tanh %168 : vector<8x32xf32>
    %170 = arith.mulf %165, %169 : vector<8x32xf32>
    %cst_44 = arith.constant dense<0.000000e+00> : vector<8x128xf32>
    %171 = tpu.matmul %170, %9, %cst_44 {dimension_numbers = #tpu.dot_dimension_numbers<[1], [0], [0], [1], [0, 0, 1, 1], [], []>} : vector<8x32xf32>, vector<32x128xf32>, vector<8x128xf32> -> vector<8x128xf32>
    %cst_45 = arith.constant dense<0.000000e+00> : vector<8x128xf32>
    %172 = tpu.matmul %149, %10, %cst_45 {dimension_numbers = #tpu.dot_dimension_numbers<[1], [0], [0], [1], [0, 0, 1, 1], [], []>} : vector<8x32xf32>, vector<32x128xf32>, vector<8x128xf32> -> vector<8x128xf32>
    %173 = arith.addf %171, %172 : vector<8x128xf32>
    %174 = vector.broadcast %11 : vector<1x128xf32> to vector<8x128xf32>
    %175 = arith.addf %173, %174 : vector<8x128xf32>
    %176 = arith.negf %175 : vector<8x128xf32>
    %177 = math.exp %176 : vector<8x128xf32>
    %cst_46 = arith.constant 1.000000e+00 : f32
    %178 = vector.broadcast %cst_46 : f32 to vector<8x128xf32>
    %179 = arith.addf %178, %177 : vector<8x128xf32>
    %180 = arith.divf %178, %179 : vector<8x128xf32>
    %181 = vector.extract_strided_slice %180 {offsets = [0, 0], sizes = [8, 32], strides = [1, 1]} : vector<8x128xf32> to vector<8x32xf32>
    %182 = vector.extract_strided_slice %180 {offsets = [0, 32], sizes = [8, 32], strides = [1, 1]} : vector<8x128xf32> to vector<8x32xf32>
    %183 = vector.extract_strided_slice %180 {offsets = [0, 64], sizes = [8, 32], strides = [1, 1]} : vector<8x128xf32> to vector<8x32xf32>
    %cst_47 = arith.constant 2.000000e+00 : f32
    %184 = vector.broadcast %cst_47 : f32 to vector<8x32xf32>
    %185 = arith.mulf %183, %184 : vector<8x32xf32>
    %cst_48 = arith.constant 1.000000e+00 : f32
    %186 = vector.broadcast %cst_48 : f32 to vector<8x32xf32>
    %187 = arith.subf %185, %186 : vector<8x32xf32>
    %188 = vector.extract_strided_slice %180 {offsets = [0, 96], sizes = [8, 32], strides = [1, 1]} : vector<8x128xf32> to vector<8x32xf32>
    %189 = arith.mulf %182, %147 : vector<8x32xf32>
    %190 = arith.mulf %181, %187 : vector<8x32xf32>
    %191 = arith.addf %189, %190 : vector<8x32xf32>
    %192 = math.tanh %191 : vector<8x32xf32>
    %193 = arith.mulf %188, %192 : vector<8x32xf32>
    %194 = vector.extract_strided_slice %7 {offsets = [32, 0], sizes = [8, 128], strides = [1, 1]} : vector<64x128xf32> to vector<8x128xf32>
    %cst_49 = arith.constant dense<0.000000e+00> : vector<8x128xf32>
    %195 = tpu.matmul %170, %8, %cst_49 {dimension_numbers = #tpu.dot_dimension_numbers<[1], [0], [0], [1], [0, 0, 1, 1], [], []>} : vector<8x32xf32>, vector<32x128xf32>, vector<8x128xf32> -> vector<8x128xf32>
    %196 = arith.addf %194, %195 : vector<8x128xf32>
    %197 = arith.negf %196 : vector<8x128xf32>
    %198 = math.exp %197 : vector<8x128xf32>
    %cst_50 = arith.constant 1.000000e+00 : f32
    %199 = vector.broadcast %cst_50 : f32 to vector<8x128xf32>
    %200 = arith.addf %199, %198 : vector<8x128xf32>
    %201 = arith.divf %199, %200 : vector<8x128xf32>
    %202 = vector.extract_strided_slice %201 {offsets = [0, 0], sizes = [8, 32], strides = [1, 1]} : vector<8x128xf32> to vector<8x32xf32>
    %203 = vector.extract_strided_slice %201 {offsets = [0, 32], sizes = [8, 32], strides = [1, 1]} : vector<8x128xf32> to vector<8x32xf32>
    %204 = vector.extract_strided_slice %201 {offsets = [0, 64], sizes = [8, 32], strides = [1, 1]} : vector<8x128xf32> to vector<8x32xf32>
    %cst_51 = arith.constant 2.000000e+00 : f32
    %205 = vector.broadcast %cst_51 : f32 to vector<8x32xf32>
    %206 = arith.mulf %204, %205 : vector<8x32xf32>
    %cst_52 = arith.constant 1.000000e+00 : f32
    %207 = vector.broadcast %cst_52 : f32 to vector<8x32xf32>
    %208 = arith.subf %206, %207 : vector<8x32xf32>
    %209 = vector.extract_strided_slice %201 {offsets = [0, 96], sizes = [8, 32], strides = [1, 1]} : vector<8x128xf32> to vector<8x32xf32>
    %210 = arith.mulf %203, %168 : vector<8x32xf32>
    %211 = arith.mulf %202, %208 : vector<8x32xf32>
    %212 = arith.addf %210, %211 : vector<8x32xf32>
    %213 = math.tanh %212 : vector<8x32xf32>
    %214 = arith.mulf %209, %213 : vector<8x32xf32>
    %cst_53 = arith.constant dense<0.000000e+00> : vector<8x128xf32>
    %215 = tpu.matmul %214, %9, %cst_53 {dimension_numbers = #tpu.dot_dimension_numbers<[1], [0], [0], [1], [0, 0, 1, 1], [], []>} : vector<8x32xf32>, vector<32x128xf32>, vector<8x128xf32> -> vector<8x128xf32>
    %cst_54 = arith.constant dense<0.000000e+00> : vector<8x128xf32>
    %216 = tpu.matmul %193, %10, %cst_54 {dimension_numbers = #tpu.dot_dimension_numbers<[1], [0], [0], [1], [0, 0, 1, 1], [], []>} : vector<8x32xf32>, vector<32x128xf32>, vector<8x128xf32> -> vector<8x128xf32>
    %217 = arith.addf %215, %216 : vector<8x128xf32>
    %218 = vector.broadcast %11 : vector<1x128xf32> to vector<8x128xf32>
    %219 = arith.addf %217, %218 : vector<8x128xf32>
    %220 = arith.negf %219 : vector<8x128xf32>
    %221 = math.exp %220 : vector<8x128xf32>
    %cst_55 = arith.constant 1.000000e+00 : f32
    %222 = vector.broadcast %cst_55 : f32 to vector<8x128xf32>
    %223 = arith.addf %222, %221 : vector<8x128xf32>
    %224 = arith.divf %222, %223 : vector<8x128xf32>
    %225 = vector.extract_strided_slice %224 {offsets = [0, 0], sizes = [8, 32], strides = [1, 1]} : vector<8x128xf32> to vector<8x32xf32>
    %226 = vector.extract_strided_slice %224 {offsets = [0, 32], sizes = [8, 32], strides = [1, 1]} : vector<8x128xf32> to vector<8x32xf32>
    %227 = vector.extract_strided_slice %224 {offsets = [0, 64], sizes = [8, 32], strides = [1, 1]} : vector<8x128xf32> to vector<8x32xf32>
    %cst_56 = arith.constant 2.000000e+00 : f32
    %228 = vector.broadcast %cst_56 : f32 to vector<8x32xf32>
    %229 = arith.mulf %227, %228 : vector<8x32xf32>
    %cst_57 = arith.constant 1.000000e+00 : f32
    %230 = vector.broadcast %cst_57 : f32 to vector<8x32xf32>
    %231 = arith.subf %229, %230 : vector<8x32xf32>
    %232 = vector.extract_strided_slice %224 {offsets = [0, 96], sizes = [8, 32], strides = [1, 1]} : vector<8x128xf32> to vector<8x32xf32>
    %233 = arith.mulf %226, %191 : vector<8x32xf32>
    %234 = arith.mulf %225, %231 : vector<8x32xf32>
    %235 = arith.addf %233, %234 : vector<8x32xf32>
    %236 = math.tanh %235 : vector<8x32xf32>
    %237 = arith.mulf %232, %236 : vector<8x32xf32>
    %238 = vector.extract_strided_slice %7 {offsets = [40, 0], sizes = [8, 128], strides = [1, 1]} : vector<64x128xf32> to vector<8x128xf32>
    %cst_58 = arith.constant dense<0.000000e+00> : vector<8x128xf32>
    %239 = tpu.matmul %214, %8, %cst_58 {dimension_numbers = #tpu.dot_dimension_numbers<[1], [0], [0], [1], [0, 0, 1, 1], [], []>} : vector<8x32xf32>, vector<32x128xf32>, vector<8x128xf32> -> vector<8x128xf32>
    %240 = arith.addf %238, %239 : vector<8x128xf32>
    %241 = arith.negf %240 : vector<8x128xf32>
    %242 = math.exp %241 : vector<8x128xf32>
    %cst_59 = arith.constant 1.000000e+00 : f32
    %243 = vector.broadcast %cst_59 : f32 to vector<8x128xf32>
    %244 = arith.addf %243, %242 : vector<8x128xf32>
    %245 = arith.divf %243, %244 : vector<8x128xf32>
    %246 = vector.extract_strided_slice %245 {offsets = [0, 0], sizes = [8, 32], strides = [1, 1]} : vector<8x128xf32> to vector<8x32xf32>
    %247 = vector.extract_strided_slice %245 {offsets = [0, 32], sizes = [8, 32], strides = [1, 1]} : vector<8x128xf32> to vector<8x32xf32>
    %248 = vector.extract_strided_slice %245 {offsets = [0, 64], sizes = [8, 32], strides = [1, 1]} : vector<8x128xf32> to vector<8x32xf32>
    %cst_60 = arith.constant 2.000000e+00 : f32
    %249 = vector.broadcast %cst_60 : f32 to vector<8x32xf32>
    %250 = arith.mulf %248, %249 : vector<8x32xf32>
    %cst_61 = arith.constant 1.000000e+00 : f32
    %251 = vector.broadcast %cst_61 : f32 to vector<8x32xf32>
    %252 = arith.subf %250, %251 : vector<8x32xf32>
    %253 = vector.extract_strided_slice %245 {offsets = [0, 96], sizes = [8, 32], strides = [1, 1]} : vector<8x128xf32> to vector<8x32xf32>
    %254 = arith.mulf %247, %212 : vector<8x32xf32>
    %255 = arith.mulf %246, %252 : vector<8x32xf32>
    %256 = arith.addf %254, %255 : vector<8x32xf32>
    %257 = math.tanh %256 : vector<8x32xf32>
    %258 = arith.mulf %253, %257 : vector<8x32xf32>
    %cst_62 = arith.constant dense<0.000000e+00> : vector<8x128xf32>
    %259 = tpu.matmul %258, %9, %cst_62 {dimension_numbers = #tpu.dot_dimension_numbers<[1], [0], [0], [1], [0, 0, 1, 1], [], []>} : vector<8x32xf32>, vector<32x128xf32>, vector<8x128xf32> -> vector<8x128xf32>
    %cst_63 = arith.constant dense<0.000000e+00> : vector<8x128xf32>
    %260 = tpu.matmul %237, %10, %cst_63 {dimension_numbers = #tpu.dot_dimension_numbers<[1], [0], [0], [1], [0, 0, 1, 1], [], []>} : vector<8x32xf32>, vector<32x128xf32>, vector<8x128xf32> -> vector<8x128xf32>
    %261 = arith.addf %259, %260 : vector<8x128xf32>
    %262 = vector.broadcast %11 : vector<1x128xf32> to vector<8x128xf32>
    %263 = arith.addf %261, %262 : vector<8x128xf32>
    %264 = arith.negf %263 : vector<8x128xf32>
    %265 = math.exp %264 : vector<8x128xf32>
    %cst_64 = arith.constant 1.000000e+00 : f32
    %266 = vector.broadcast %cst_64 : f32 to vector<8x128xf32>
    %267 = arith.addf %266, %265 : vector<8x128xf32>
    %268 = arith.divf %266, %267 : vector<8x128xf32>
    %269 = vector.extract_strided_slice %268 {offsets = [0, 0], sizes = [8, 32], strides = [1, 1]} : vector<8x128xf32> to vector<8x32xf32>
    %270 = vector.extract_strided_slice %268 {offsets = [0, 32], sizes = [8, 32], strides = [1, 1]} : vector<8x128xf32> to vector<8x32xf32>
    %271 = vector.extract_strided_slice %268 {offsets = [0, 64], sizes = [8, 32], strides = [1, 1]} : vector<8x128xf32> to vector<8x32xf32>
    %cst_65 = arith.constant 2.000000e+00 : f32
    %272 = vector.broadcast %cst_65 : f32 to vector<8x32xf32>
    %273 = arith.mulf %271, %272 : vector<8x32xf32>
    %cst_66 = arith.constant 1.000000e+00 : f32
    %274 = vector.broadcast %cst_66 : f32 to vector<8x32xf32>
    %275 = arith.subf %273, %274 : vector<8x32xf32>
    %276 = vector.extract_strided_slice %268 {offsets = [0, 96], sizes = [8, 32], strides = [1, 1]} : vector<8x128xf32> to vector<8x32xf32>
    %277 = arith.mulf %270, %235 : vector<8x32xf32>
    %278 = arith.mulf %269, %275 : vector<8x32xf32>
    %279 = arith.addf %277, %278 : vector<8x32xf32>
    %280 = math.tanh %279 : vector<8x32xf32>
    %281 = arith.mulf %276, %280 : vector<8x32xf32>
    %282 = vector.extract_strided_slice %7 {offsets = [48, 0], sizes = [8, 128], strides = [1, 1]} : vector<64x128xf32> to vector<8x128xf32>
    %cst_67 = arith.constant dense<0.000000e+00> : vector<8x128xf32>
    %283 = tpu.matmul %258, %8, %cst_67 {dimension_numbers = #tpu.dot_dimension_numbers<[1], [0], [0], [1], [0, 0, 1, 1], [], []>} : vector<8x32xf32>, vector<32x128xf32>, vector<8x128xf32> -> vector<8x128xf32>
    %284 = arith.addf %282, %283 : vector<8x128xf32>
    %285 = arith.negf %284 : vector<8x128xf32>
    %286 = math.exp %285 : vector<8x128xf32>
    %cst_68 = arith.constant 1.000000e+00 : f32
    %287 = vector.broadcast %cst_68 : f32 to vector<8x128xf32>
    %288 = arith.addf %287, %286 : vector<8x128xf32>
    %289 = arith.divf %287, %288 : vector<8x128xf32>
    %290 = vector.extract_strided_slice %289 {offsets = [0, 0], sizes = [8, 32], strides = [1, 1]} : vector<8x128xf32> to vector<8x32xf32>
    %291 = vector.extract_strided_slice %289 {offsets = [0, 32], sizes = [8, 32], strides = [1, 1]} : vector<8x128xf32> to vector<8x32xf32>
    %292 = vector.extract_strided_slice %289 {offsets = [0, 64], sizes = [8, 32], strides = [1, 1]} : vector<8x128xf32> to vector<8x32xf32>
    %cst_69 = arith.constant 2.000000e+00 : f32
    %293 = vector.broadcast %cst_69 : f32 to vector<8x32xf32>
    %294 = arith.mulf %292, %293 : vector<8x32xf32>
    %cst_70 = arith.constant 1.000000e+00 : f32
    %295 = vector.broadcast %cst_70 : f32 to vector<8x32xf32>
    %296 = arith.subf %294, %295 : vector<8x32xf32>
    %297 = vector.extract_strided_slice %289 {offsets = [0, 96], sizes = [8, 32], strides = [1, 1]} : vector<8x128xf32> to vector<8x32xf32>
    %298 = arith.mulf %291, %256 : vector<8x32xf32>
    %299 = arith.mulf %290, %296 : vector<8x32xf32>
    %300 = arith.addf %298, %299 : vector<8x32xf32>
    %301 = math.tanh %300 : vector<8x32xf32>
    %302 = arith.mulf %297, %301 : vector<8x32xf32>
    %cst_71 = arith.constant dense<0.000000e+00> : vector<8x128xf32>
    %303 = tpu.matmul %302, %9, %cst_71 {dimension_numbers = #tpu.dot_dimension_numbers<[1], [0], [0], [1], [0, 0, 1, 1], [], []>} : vector<8x32xf32>, vector<32x128xf32>, vector<8x128xf32> -> vector<8x128xf32>
    %cst_72 = arith.constant dense<0.000000e+00> : vector<8x128xf32>
    %304 = tpu.matmul %281, %10, %cst_72 {dimension_numbers = #tpu.dot_dimension_numbers<[1], [0], [0], [1], [0, 0, 1, 1], [], []>} : vector<8x32xf32>, vector<32x128xf32>, vector<8x128xf32> -> vector<8x128xf32>
    %305 = arith.addf %303, %304 : vector<8x128xf32>
    %306 = vector.broadcast %11 : vector<1x128xf32> to vector<8x128xf32>
    %307 = arith.addf %305, %306 : vector<8x128xf32>
    %308 = arith.negf %307 : vector<8x128xf32>
    %309 = math.exp %308 : vector<8x128xf32>
    %cst_73 = arith.constant 1.000000e+00 : f32
    %310 = vector.broadcast %cst_73 : f32 to vector<8x128xf32>
    %311 = arith.addf %310, %309 : vector<8x128xf32>
    %312 = arith.divf %310, %311 : vector<8x128xf32>
    %313 = vector.extract_strided_slice %312 {offsets = [0, 0], sizes = [8, 32], strides = [1, 1]} : vector<8x128xf32> to vector<8x32xf32>
    %314 = vector.extract_strided_slice %312 {offsets = [0, 32], sizes = [8, 32], strides = [1, 1]} : vector<8x128xf32> to vector<8x32xf32>
    %315 = vector.extract_strided_slice %312 {offsets = [0, 64], sizes = [8, 32], strides = [1, 1]} : vector<8x128xf32> to vector<8x32xf32>
    %cst_74 = arith.constant 2.000000e+00 : f32
    %316 = vector.broadcast %cst_74 : f32 to vector<8x32xf32>
    %317 = arith.mulf %315, %316 : vector<8x32xf32>
    %cst_75 = arith.constant 1.000000e+00 : f32
    %318 = vector.broadcast %cst_75 : f32 to vector<8x32xf32>
    %319 = arith.subf %317, %318 : vector<8x32xf32>
    %320 = vector.extract_strided_slice %312 {offsets = [0, 96], sizes = [8, 32], strides = [1, 1]} : vector<8x128xf32> to vector<8x32xf32>
    %321 = arith.mulf %314, %279 : vector<8x32xf32>
    %322 = arith.mulf %313, %319 : vector<8x32xf32>
    %323 = arith.addf %321, %322 : vector<8x32xf32>
    %324 = math.tanh %323 : vector<8x32xf32>
    %325 = arith.mulf %320, %324 : vector<8x32xf32>
    %326 = vector.extract_strided_slice %7 {offsets = [56, 0], sizes = [8, 128], strides = [1, 1]} : vector<64x128xf32> to vector<8x128xf32>
    %cst_76 = arith.constant dense<0.000000e+00> : vector<8x128xf32>
    %327 = tpu.matmul %302, %8, %cst_76 {dimension_numbers = #tpu.dot_dimension_numbers<[1], [0], [0], [1], [0, 0, 1, 1], [], []>} : vector<8x32xf32>, vector<32x128xf32>, vector<8x128xf32> -> vector<8x128xf32>
    %328 = arith.addf %326, %327 : vector<8x128xf32>
    %329 = arith.negf %328 : vector<8x128xf32>
    %330 = math.exp %329 : vector<8x128xf32>
    %cst_77 = arith.constant 1.000000e+00 : f32
    %331 = vector.broadcast %cst_77 : f32 to vector<8x128xf32>
    %332 = arith.addf %331, %330 : vector<8x128xf32>
    %333 = arith.divf %331, %332 : vector<8x128xf32>
    %334 = vector.extract_strided_slice %333 {offsets = [0, 0], sizes = [8, 32], strides = [1, 1]} : vector<8x128xf32> to vector<8x32xf32>
    %335 = vector.extract_strided_slice %333 {offsets = [0, 32], sizes = [8, 32], strides = [1, 1]} : vector<8x128xf32> to vector<8x32xf32>
    %336 = vector.extract_strided_slice %333 {offsets = [0, 64], sizes = [8, 32], strides = [1, 1]} : vector<8x128xf32> to vector<8x32xf32>
    %cst_78 = arith.constant 2.000000e+00 : f32
    %337 = vector.broadcast %cst_78 : f32 to vector<8x32xf32>
    %338 = arith.mulf %336, %337 : vector<8x32xf32>
    %cst_79 = arith.constant 1.000000e+00 : f32
    %339 = vector.broadcast %cst_79 : f32 to vector<8x32xf32>
    %340 = arith.subf %338, %339 : vector<8x32xf32>
    %341 = vector.extract_strided_slice %333 {offsets = [0, 96], sizes = [8, 32], strides = [1, 1]} : vector<8x128xf32> to vector<8x32xf32>
    %342 = arith.mulf %335, %300 : vector<8x32xf32>
    %343 = arith.mulf %334, %340 : vector<8x32xf32>
    %344 = arith.addf %342, %343 : vector<8x32xf32>
    %345 = math.tanh %344 : vector<8x32xf32>
    %346 = arith.mulf %341, %345 : vector<8x32xf32>
    %cst_80 = arith.constant dense<0.000000e+00> : vector<8x128xf32>
    %347 = tpu.matmul %346, %9, %cst_80 {dimension_numbers = #tpu.dot_dimension_numbers<[1], [0], [0], [1], [0, 0, 1, 1], [], []>} : vector<8x32xf32>, vector<32x128xf32>, vector<8x128xf32> -> vector<8x128xf32>
    %cst_81 = arith.constant dense<0.000000e+00> : vector<8x128xf32>
    %348 = tpu.matmul %325, %10, %cst_81 {dimension_numbers = #tpu.dot_dimension_numbers<[1], [0], [0], [1], [0, 0, 1, 1], [], []>} : vector<8x32xf32>, vector<32x128xf32>, vector<8x128xf32> -> vector<8x128xf32>
    %349 = arith.addf %347, %348 : vector<8x128xf32>
    %350 = vector.broadcast %11 : vector<1x128xf32> to vector<8x128xf32>
    %351 = arith.addf %349, %350 : vector<8x128xf32>
    %352 = arith.negf %351 : vector<8x128xf32>
    %353 = math.exp %352 : vector<8x128xf32>
    %cst_82 = arith.constant 1.000000e+00 : f32
    %354 = vector.broadcast %cst_82 : f32 to vector<8x128xf32>
    %355 = arith.addf %354, %353 : vector<8x128xf32>
    %356 = arith.divf %354, %355 : vector<8x128xf32>
    %357 = vector.extract_strided_slice %356 {offsets = [0, 0], sizes = [8, 32], strides = [1, 1]} : vector<8x128xf32> to vector<8x32xf32>
    %358 = vector.extract_strided_slice %356 {offsets = [0, 32], sizes = [8, 32], strides = [1, 1]} : vector<8x128xf32> to vector<8x32xf32>
    %359 = vector.extract_strided_slice %356 {offsets = [0, 64], sizes = [8, 32], strides = [1, 1]} : vector<8x128xf32> to vector<8x32xf32>
    %cst_83 = arith.constant 2.000000e+00 : f32
    %360 = vector.broadcast %cst_83 : f32 to vector<8x32xf32>
    %361 = arith.mulf %359, %360 : vector<8x32xf32>
    %cst_84 = arith.constant 1.000000e+00 : f32
    %362 = vector.broadcast %cst_84 : f32 to vector<8x32xf32>
    %363 = arith.subf %361, %362 : vector<8x32xf32>
    %364 = vector.extract_strided_slice %356 {offsets = [0, 96], sizes = [8, 32], strides = [1, 1]} : vector<8x128xf32> to vector<8x32xf32>
    %365 = arith.mulf %358, %323 : vector<8x32xf32>
    %366 = arith.mulf %357, %363 : vector<8x32xf32>
    %367 = arith.addf %365, %366 : vector<8x32xf32>
    %368 = math.tanh %367 : vector<8x32xf32>
    %369 = arith.mulf %364, %368 : vector<8x32xf32>
    %cst_85 = arith.constant dense<0.000000e+00> : vector<8x128xf32>
    %370 = tpu.matmul %369, %12, %cst_85 {dimension_numbers = #tpu.dot_dimension_numbers<[1], [0], [0], [1], [0, 0, 1, 1], [], []>} : vector<8x32xf32>, vector<32x128xf32>, vector<8x128xf32> -> vector<8x128xf32>
    %371 = vector.broadcast %13 : vector<1x128xf32> to vector<8x128xf32>
    %372 = arith.addf %370, %371 : vector<8x128xf32>
    %c0_86 = arith.constant 0 : index
    %c0_87 = arith.constant 0 : index
    %373 = vector.load %arg2[%c0_86, %c0_87] : memref<8x128xf32, #tpu.memory_space<vmem>>, vector<8x128xf32>
    tpu.vector_store %arg2[%c0_86, %c0_87], %372 {strides = array<i32>} : memref<8x128xf32, #tpu.memory_space<vmem>>, vector<8x128xf32>,
    return
  }
}

</mosaic_0001>

<llo_original>
// kernel: forward.1
$region0: #{forward.1}
  #allocation0 [shape = 'u32[]', space=smem, size = 0x4, offset = 0x4, fixed_abs, tag = 'smem constant byte address 0x4 - core index']
  #allocation1 [shape = 'u32[72,128]{1,0:T(1,128)}', space=vmem, size = 0x9000, scoped, tag = 'internal scratch']
  %s0 = inlined_call_operand.vmem [shape: s32[64,1], index: 0, kind: input, shape index: {}]
  %s1 = inlined_call_operand.hbm [shape: f32[272,128], index: 1, kind: input, shape index: {}]
  %s2 = inlined_call_operand.vmem [shape: f32[8,128], index: 2, kind: output, shape index: {}]
  %s3 = sld [smem:[#allocation0]]
  $region22: #{forward.1} parent=0
    _
  %s5 = ssub.s32 1, %s3
  %s6 = scalar_select 0, %s5, %s3
  $region1: #{forward.1} parent=0
    #allocation2 [shape = 'u8[139264]{0}', space=vmem, size = 0x22000, scoped, tag = 'input window, operand 1, single buffered']
    #allocation3 [shape = 's32[1]{0}', space=sflag, size = 0x4, scoped, tag = 'scoped memory for forward.1']
    %7 = vsyncpa [#allocation3], 0
    // Predicated region
    $region2: #{forward.1} parent=1 // pred_check
      _
    $region3: #{forward.1} parent=1 // pred_check_branch
      %9 = sbr.rel (0) target = $region5
    $region4: #{forward.1} parent=1 // pred_region
      _
    $region5: #{forward.1} parent=1 // pred_fallthru
      _
    // Predicated region
    $region6: #{forward.1} parent=1 // pred_check
      _
    $region7: #{forward.1} parent=1 // pred_check_branch
      %11 = sbr.rel (0) target = $region9
    $region8: #{forward.1} parent=1 // pred_region
      %13 = vsyncadd [#allocation3], 0
      %s14 = sshll.u32 %s1, 4
      %s15 = int_to_ptr.hbm [resolvable:$true] %s14
      %s16 = sshll.u32 [#allocation2], 4
      %s17 = int_to_ptr.vmem [resolvable:$true] %s16
      %22 = dma.hbm_to_vmem [thread:$0]  %s15, 4352, %s17, [#allocation3], 128, 128, 8
    $region9: #{forward.1} parent=1 // pred_fallthru
      _
    // Predicated region
    $region10: #{forward.1} parent=1 // pred_check
      _
    $region11: #{forward.1} parent=1 // pred_check_branch
      %24 = sbr.rel (0) target = $region13
    $region12: #{forward.1} parent=1 // pred_region
      %26 = dma.done [#allocation3], 4352
    $region13: #{forward.1} parent=1 // pred_fallthru
      _
    %v27 = vld [vmem:[%s0] sm:$0xff]
    %v28 = vld [vmem:[%s0 + $0x8] sm:$0xff]
    %v29 = vld [vmem:[%s0 + $0x10] sm:$0xff]
    %v30 = vld [vmem:[%s0 + $0x18] sm:$0xff]
    %v31 = vld [vmem:[%s0 + $0x20] sm:$0xff]
    %v32 = vld [vmem:[%s0 + $0x28] sm:$0xff]
    %v33 = vld [vmem:[%s0 + $0x30] sm:$0xff]
    %v34 = vld [vmem:[%s0 + $0x38] sm:$0xff]
    %v35 = vlaneseq
    %v36 = vand.u32 %v35, 127
    %37 = vset.pattern.permute.xlu0 0
    %38 = vperm.xlu0 %37, %v27
    %v39 = vpop.permute.xlu0 %38
    %40 = vset.pattern.permute.xlu0 0
    %41 = vperm.xlu0 %40, %v28
    %v42 = vpop.permute.xlu0 %41
    %43 = vset.pattern.permute.xlu0 0
    %44 = vperm.xlu0 %43, %v29
    %v45 = vpop.permute.xlu0 %44
    %46 = vset.pattern.permute.xlu0 0
    %47 = vperm.xlu0 %46, %v30
    %v48 = vpop.permute.xlu0 %47
    %49 = vset.pattern.permute.xlu0 0
    %50 = vperm.xlu0 %49, %v31
    %v51 = vpop.permute.xlu0 %50
    %52 = vset.pattern.permute.xlu0 0
    %53 = vperm.xlu0 %52, %v32
    %v54 = vpop.permute.xlu0 %53
    %55 = vset.pattern.permute.xlu0 0
    %56 = vperm.xlu0 %55, %v33
    %v57 = vpop.permute.xlu0 %56
    %58 = vset.pattern.permute.xlu0 0
    %59 = vperm.xlu0 %58, %v34
    %v60 = vpop.permute.xlu0 %59
    %vm61 = vcmp.eq.s32.totalorder %v36, %v39
    %vm62 = vcmp.eq.s32.totalorder %v36, %v42
    %vm63 = vcmp.eq.s32.totalorder %v36, %v45
    %vm64 = vcmp.eq.s32.totalorder %v36, %v48
    %vm65 = vcmp.eq.s32.totalorder %v36, %v51
    %vm66 = vcmp.eq.s32.totalorder %v36, %v54
    %vm67 = vcmp.eq.s32.totalorder %v36, %v57
    %vm68 = vcmp.eq.s32.totalorder %v36, %v60
    %v69 = vsel %vm61, 1, 0
    %v70 = vsel %vm62, 1, 0
    %v71 = vsel %vm63, 1, 0
    %v72 = vsel %vm64, 1, 0
    %v73 = vsel %vm65, 1, 0
    %v74 = vsel %vm66, 1, 0
    %v75 = vsel %vm67, 1, 0
    %v76 = vsel %vm68, 1, 0
    %v77 = vcvt.s32.f32 %v69
    %v78 = vcvt.s32.f32 %v70
    %v79 = vcvt.s32.f32 %v71
    %v80 = vcvt.s32.f32 %v72
    %v81 = vcvt.s32.f32 %v73
    %v82 = vcvt.s32.f32 %v74
    %v83 = vcvt.s32.f32 %v75
    %v84 = vcvt.s32.f32 %v76
    %v85 = vld [vmem:[#allocation2] sm:$0xff]
    %v86 = vld [vmem:[#allocation2 + $0x8] sm:$0xff]
    %v87 = vld [vmem:[#allocation2 + $0x10] sm:$0xff]
    %v88 = vld [vmem:[#allocation2 + $0x18] sm:$0xff]
    %v89 = vld [vmem:[#allocation2 + $0x20] sm:$0xff]
    %v90 = vld [vmem:[#allocation2 + $0x28] sm:$0xff]
    %v91 = vld [vmem:[#allocation2 + $0x30] sm:$0xff]
    %v92 = vld [vmem:[#allocation2 + $0x38] sm:$0xff]
    %v93 = vld [vmem:[#allocation2 + $0x40] sm:$0xff]
    %v94 = vld [vmem:[#allocation2 + $0x48] sm:$0xff]
    %v95 = vld [vmem:[#allocation2 + $0x50] sm:$0xff]
    %v96 = vld [vmem:[#allocation2 + $0x58] sm:$0xff]
    %v97 = vld [vmem:[#allocation2 + $0x60] sm:$0xff]
    %v98 = vld [vmem:[#allocation2 + $0x68] sm:$0xff]
    %v99 = vld [vmem:[#allocation2 + $0x70] sm:$0xff]
    %v100 = vld [vmem:[#allocation2 + $0x78] sm:$0xff]
    %101 = vmatpush.msra.mxu0 %v100
    %102 = vmatpush.msra.mxu0 %v99
    %103 = vmatpush.msra.mxu0 %v98
    %104 = vmatpush.msra.mxu0 %v97
    %105 = vmatpush.msra.mxu0 %v96
    %106 = vmatpush.msra.mxu0 %v95
    %107 = vmatpush.msra.mxu0 %v94
    %108 = vmatpush.msra.mxu0 %v93
    %109 = vmatpush.msra.mxu0 %v92
    %110 = vmatpush.msra.mxu0 %v91
    %111 = vmatpush.msra.mxu0 %v90
    %112 = vmatpush.msra.mxu0 %v89
    %113 = vmatpush.msra.mxu0 %v88
    %114 = vmatpush.msra.mxu0 %v87
    %115 = vmatpush.msra.mxu0 %v86
    %116 = vmatpush.msra.mxu0 %v85
    %117 = vmatmul.f32.gmra.mxu0 %v77
    %v118 = vpop.f32.mrf.mxu0
    %v119 = vadd.f32 0.0, %v118
    %120 = vmatmul.f32.gmra.mxu0 %v78
    %v121 = vpop.f32.mrf.mxu0
    %v122 = vadd.f32 0.0, %v121
    %123 = vmatmul.f32.gmra.mxu0 %v79
    %v124 = vpop.f32.mrf.mxu0
    %v125 = vadd.f32 0.0, %v124
    %126 = vmatmul.f32.gmra.mxu0 %v80
    %v127 = vpop.f32.mrf.mxu0
    %v128 = vadd.f32 0.0, %v127
    %129 = vmatmul.f32.gmra.mxu0 %v81
    %v130 = vpop.f32.mrf.mxu0
    %v131 = vadd.f32 0.0, %v130
    %132 = vmatmul.f32.gmra.mxu0 %v82
    %v133 = vpop.f32.mrf.mxu0
    %v134 = vadd.f32 0.0, %v133
    %135 = vmatmul.f32.gmra.mxu0 %v83
    %v136 = vpop.f32.mrf.mxu0
    %v137 = vadd.f32 0.0, %v136
    %138 = vmatmul.f32.gmra.mxu0 %v84
    %v139 = vpop.f32.mrf.mxu0
    %v140 = vadd.f32 0.0, %v139
    %141 = vdwg.mxu0
    %v142 = vld [vmem:[#allocation2 + $0x80] sm:$0xff]
    %v143 = vld [vmem:[#allocation2 + $0x88] sm:$0xff]
    %v144 = vld [vmem:[#allocation2 + $0x90] sm:$0xff]
    %v145 = vld [vmem:[#allocation2 + $0x98] sm:$0xff]
    %v146 = vld [vmem:[#allocation2 + $0xa0] sm:$0xff]
    %v147 = vld [vmem:[#allocation2 + $0xa8] sm:$0xff]
    %v148 = vld [vmem:[#allocation2 + $0xb0] sm:$0xff]
    %v149 = vld [vmem:[#allocation2 + $0xb8] sm:$0xff]
    %v150 = vld [vmem:[#allocation2 + $0xc0] sm:$0xff]
    %v151 = vld [vmem:[#allocation2 + $0xc8] sm:$0xff]
    %v152 = vld [vmem:[#allocation2 + $0xd0] sm:$0xff]
    %v153 = vld [vmem:[#allocation2 + $0xd8] sm:$0xff]
    %v154 = vld [vmem:[#allocation2 + $0xe0] sm:$0x1]
    %v155 = vld [vmem:[#allocation2 + $0xe8] sm:$0xff]
    %v156 = vld [vmem:[#allocation2 + $0xf0] sm:$0xff]
    %v157 = vld [vmem:[#allocation2 + $0xf8] sm:$0xff]
    %v158 = vld [vmem:[#allocation2 + $0x100] sm:$0xff]
    %v159 = vld [vmem:[#allocation2 + $0x108] sm:$0x1]
    %vm160 = vcmask 261120
    %v162 = vsel %vm160, 0.0, 0
    %164 = vmatpush.msra.mxu0 0.0
    %165 = vmatpush.msra.mxu0 0.0
    %166 = vmatpush.msra.mxu0 0.0
    %167 = vmatpush.msra.mxu0 0.0
    %168 = vmatpush.msra.mxu0 0.0
    %169 = vmatpush.msra.mxu0 0.0
    %170 = vmatpush.msra.mxu0 0.0
    %171 = vmatpush.msra.mxu0 0.0
    %172 = vmatpush.msra.mxu0 0.0
    %173 = vmatpush.msra.mxu0 0.0
    %174 = vmatpush.msra.mxu0 0.0
    %175 = vmatpush.msra.mxu0 0.0
    %176 = vmatpush.msra.mxu0 %v145
    %177 = vmatpush.msra.mxu0 %v144
    %178 = vmatpush.msra.mxu0 %v143
    %179 = vmatpush.msra.mxu0 %v142
    %180 = vmatmul.f32.gmra.mxu0 %v162
    %v181 = vpop.f32.mrf.mxu0
    %v182 = vadd.f32 0.0, %v181
    %183 = vdwg.mxu0
    %v184 = vadd.f32 %v119, %v182
    %v185 = vxor.u32 %v184, 2147483648
    %v186 = vmul.f32 %v185, 1.442695
    %v187 = vpow.pop %v186
    %v188 = vadd.f32 %v187, 1.0
    %v189 = vrcp.pop %v188
    %v190 = vmul.f32 %v188, %v189
    %v191 = vsub.f32 1.0, %v190
    %v192 = vmul.f32 %v189, %v191
    %v193 = vadd.f32 %v189, %v192
    %vm194 = vweird.f32 %v188
    %vm195 = vweird.f32 %v189
    %vm196 = vmor %vm194, %vm195
    %v197 = vsel %vm196, %v189, %v193
    %v198 = vand.u32 2147483647, %v188
    %vm199 = vcmp.eq.f32.partialorder %v198, 8.507059e+37
    %v200 = vand.u32 %v188, 2147483648
    %v201 = vor.u32 1.1754944e-38, %v200
    %v202 = vsel %vm199, %v201, %v197
    %v203 = vmul.f32 1.0, %v202
    %v204 = vmul.f32 %v203, 2.0
    %v205 = vsub.f32 %v204, 1.0
    %v206 = vmul.f32 %v203, 0.0
    %208 = vrot.lane.b32.xlu0 %v205, 64
    %v209 = vpop.permute.xlu0 %208
    %v211 = vmul.f32 %v203, %v209
    %213 = vrot.lane.b32.xlu0 %v211, 32
    %v214 = vpop.permute.xlu0 %213
    %v216 = vadd.f32 %v206, %v214
    %v217 = vtanh.pop %v216
    %219 = vrot.lane.b32.xlu0 %v217, 64
    %v220 = vpop.permute.xlu0 %219
    %v222 = vmul.f32 %v203, %v220
    %223 = vmatpush.msra.mxu0 0.0
    %224 = vmatpush.msra.mxu0 0.0
    %225 = vmatpush.msra.mxu0 0.0
    %226 = vmatpush.msra.mxu0 0.0
    %227 = vmatpush.msra.mxu0 0.0
    %228 = vmatpush.msra.mxu0 0.0
    %229 = vmatpush.msra.mxu0 0.0
    %230 = vmatpush.msra.mxu0 0.0
    %231 = vmatpush.msra.mxu0 0.0
    %232 = vmatpush.msra.mxu0 0.0
    %233 = vmatpush.msra.mxu0 0.0
    %234 = vmatpush.msra.mxu0 0.0
    %235 = vmatpush.msra.mxu0 %v153
    %236 = vmatpush.msra.mxu0 %v152
    %237 = vmatpush.msra.mxu0 %v151
    %238 = vmatpush.msra.mxu0 %v150
    %239 = vmatmul.f32.gmra.mxu0 %v162
    %v240 = vpop.f32.mrf.mxu0
    %v241 = vadd.f32 0.0, %v240
    %242 = vdwg.mxu0
    %244 = vrot.lane.b32.xlu0 %v222, 32
    %v245 = vpop.permute.xlu0 %244
    %v246 = vsel %vm160, %v245, 0
    %248 = vmatpush.msra.mxu0 0.0
    %249 = vmatpush.msra.mxu0 0.0
    %250 = vmatpush.msra.mxu0 0.0
    %251 = vmatpush.msra.mxu0 0.0
    %252 = vmatpush.msra.mxu0 0.0
    %253 = vmatpush.msra.mxu0 0.0
    %254 = vmatpush.msra.mxu0 0.0
    %255 = vmatpush.msra.mxu0 0.0
    %256 = vmatpush.msra.mxu0 0.0
    %257 = vmatpush.msra.mxu0 0.0
    %258 = vmatpush.msra.mxu0 0.0
    %259 = vmatpush.msra.mxu0 0.0
    %260 = vmatpush.msra.mxu0 %v149
    %261 = vmatpush.msra.mxu0 %v148
    %262 = vmatpush.msra.mxu0 %v147
    %263 = vmatpush.msra.mxu0 %v146
    %264 = vmatmul.f32.gmra.mxu0 %v246
    %v265 = vpop.f32.mrf.mxu0
    %v266 = vadd.f32 %v241, %v265
    %267 = vdwg.mxu0
    %v268 = vperm.slane %v154, 0
    %v269 = vadd.f32 %v266, %v268
    %v270 = vxor.u32 %v269, 2147483648
    %v271 = vmul.f32 %v270, 1.442695
    %v272 = vpow.pop %v271
    %v273 = vadd.f32 %v272, 1.0
    %v274 = vrcp.pop %v273
    %v275 = vmul.f32 %v273, %v274
    %v276 = vsub.f32 1.0, %v275
    %v277 = vmul.f32 %v274, %v276
    %v278 = vadd.f32 %v274, %v277
    %vm279 = vweird.f32 %v273
    %vm280 = vweird.f32 %v274
    %vm281 = vmor %vm279, %vm280
    %v282 = vsel %vm281, %v274, %v278
    %v283 = vand.u32 2147483647, %v273
    %vm284 = vcmp.eq.f32.partialorder %v283, 8.507059e+37
    %v285 = vand.u32 %v273, 2147483648
    %v286 = vor.u32 1.1754944e-38, %v285
    %v287 = vsel %vm284, %v286, %v282
    %v288 = vmul.f32 1.0, %v287
    %v289 = vmul.f32 %v288, 2.0
    %v290 = vsub.f32 %v289, 1.0
    %v291 = vmul.f32 %v288, 0.0
    %293 = vrot.lane.b32.xlu0 %v290, 64
    %v294 = vpop.permute.xlu0 %293
    %v296 = vmul.f32 %v288, %v294
    %298 = vrot.lane.b32.xlu0 %v296, 32
    %v299 = vpop.permute.xlu0 %298
    %v301 = vadd.f32 %v291, %v299
    %v302 = vtanh.pop %v301
    %304 = vrot.lane.b32.xlu0 %v302, 64
    %v305 = vpop.permute.xlu0 %304
    %v307 = vmul.f32 %v288, %v305
    %308 = vmatpush.msra.mxu0 0.0
    %309 = vmatpush.msra.mxu0 0.0
    %310 = vmatpush.msra.mxu0 0.0
    %311 = vmatpush.msra.mxu0 0.0
    %312 = vmatpush.msra.mxu0 0.0
    %313 = vmatpush.msra.mxu0 0.0
    %314 = vmatpush.msra.mxu0 0.0
    %315 = vmatpush.msra.mxu0 0.0
    %316 = vmatpush.msra.mxu0 0.0
    %317 = vmatpush.msra.mxu0 0.0
    %318 = vmatpush.msra.mxu0 0.0
    %319 = vmatpush.msra.mxu0 0.0
    %320 = vmatpush.msra.mxu0 %v145
    %321 = vmatpush.msra.mxu0 %v144
    %322 = vmatpush.msra.mxu0 %v143
    %323 = vmatpush.msra.mxu0 %v142
    %324 = vmatmul.f32.gmra.mxu0 %v246
    %v325 = vpop.f32.mrf.mxu0
    %v326 = vadd.f32 0.0, %v325
    %327 = vdwg.mxu0
    %v328 = vadd.f32 %v122, %v326
    %v329 = vxor.u32 %v328, 2147483648
    %v330 = vmul.f32 %v329, 1.442695
    %v331 = vpow.pop %v330
    %v332 = vadd.f32 %v331, 1.0
    %v333 = vrcp.pop %v332
    %v334 = vmul.f32 %v332, %v333
    %v335 = vsub.f32 1.0, %v334
    %v336 = vmul.f32 %v333, %v335
    %v337 = vadd.f32 %v333, %v336
    %vm338 = vweird.f32 %v332
    %vm339 = vweird.f32 %v333
    %vm340 = vmor %vm338, %vm339
    %v341 = vsel %vm340, %v333, %v337
    %v342 = vand.u32 2147483647, %v332
    %vm343 = vcmp.eq.f32.partialorder %v342, 8.507059e+37
    %v344 = vand.u32 %v332, 2147483648
    %v345 = vor.u32 1.1754944e-38, %v344
    %v346 = vsel %vm343, %v345, %v341
    %v347 = vmul.f32 1.0, %v346
    %v348 = vmul.f32 %v347, 2.0
    %v349 = vsub.f32 %v348, 1.0
    %v350 = vmul.f32 %v347, %v216
    %352 = vrot.lane.b32.xlu0 %v349, 64
    %v353 = vpop.permute.xlu0 %352
    %v355 = vmul.f32 %v347, %v353
    %357 = vrot.lane.b32.xlu0 %v355, 32
    %v358 = vpop.permute.xlu0 %357
    %v360 = vadd.f32 %v350, %v358
    %v361 = vtanh.pop %v360
    %363 = vrot.lane.b32.xlu0 %v361, 64
    %v364 = vpop.permute.xlu0 %363
    %v366 = vmul.f32 %v347, %v364
    %368 = vrot.lane.b32.xlu0 %v307, 32
    %v369 = vpop.permute.xlu0 %368
    %v370 = vsel %vm160, %v369, 0
    %372 = vmatpush.msra.mxu0 0.0
    %373 = vmatpush.msra.mxu0 0.0
    %374 = vmatpush.msra.mxu0 0.0
    %375 = vmatpush.msra.mxu0 0.0
    %376 = vmatpush.msra.mxu0 0.0
    %377 = vmatpush.msra.mxu0 0.0
    %378 = vmatpush.msra.mxu0 0.0
    %379 = vmatpush.msra.mxu0 0.0
    %380 = vmatpush.msra.mxu0 0.0
    %381 = vmatpush.msra.mxu0 0.0
    %382 = vmatpush.msra.mxu0 0.0
    %383 = vmatpush.msra.mxu0 0.0
    %384 = vmatpush.msra.mxu0 %v153
    %385 = vmatpush.msra.mxu0 %v152
    %386 = vmatpush.msra.mxu0 %v151
    %387 = vmatpush.msra.mxu0 %v150
    %388 = vmatmul.f32.gmra.mxu0 %v370
    %v389 = vpop.f32.mrf.mxu0
    %v390 = vadd.f32 0.0, %v389
    %391 = vdwg.mxu0
    %393 = vrot.lane.b32.xlu0 %v366, 32
    %v394 = vpop.permute.xlu0 %393
    %v395 = vsel %vm160, %v394, 0
    %397 = vmatpush.msra.mxu0 0.0
    %398 = vmatpush.msra.mxu0 0.0
    %399 = vmatpush.msra.mxu0 0.0
    %400 = vmatpush.msra.mxu0 0.0
    %401 = vmatpush.msra.mxu0 0.0
    %402 = vmatpush.msra.mxu0 0.0
    %403 = vmatpush.msra.mxu0 0.0
    %404 = vmatpush.msra.mxu0 0.0
    %405 = vmatpush.msra.mxu0 0.0
    %406 = vmatpush.msra.mxu0 0.0
    %407 = vmatpush.msra.mxu0 0.0
    %408 = vmatpush.msra.mxu0 0.0
    %409 = vmatpush.msra.mxu0 %v149
    %410 = vmatpush.msra.mxu0 %v148
    %411 = vmatpush.msra.mxu0 %v147
    %412 = vmatpush.msra.mxu0 %v146
    %413 = vmatmul.f32.gmra.mxu0 %v395
    %v414 = vpop.f32.mrf.mxu0
    %v415 = vadd.f32 %v390, %v414
    %416 = vdwg.mxu0
    %v417 = vadd.f32 %v415, %v268
    %v418 = vxor.u32 %v417, 2147483648
    %v419 = vmul.f32 %v418, 1.442695
    %v420 = vpow.pop %v419
    %v421 = vadd.f32 %v420, 1.0
    %v422 = vrcp.pop %v421
    %v423 = vmul.f32 %v421, %v422
    %v424 = vsub.f32 1.0, %v423
    %v425 = vmul.f32 %v422, %v424
    %v426 = vadd.f32 %v422, %v425
    %vm427 = vweird.f32 %v421
    %vm428 = vweird.f32 %v422
    %vm429 = vmor %vm427, %vm428
    %v430 = vsel %vm429, %v422, %v426
    %v431 = vand.u32 2147483647, %v421
    %vm432 = vcmp.eq.f32.partialorder %v431, 8.507059e+37
    %v433 = vand.u32 %v421, 2147483648
    %v434 = vor.u32 1.1754944e-38, %v433
    %v435 = vsel %vm432, %v434, %v430
    %v436 = vmul.f32 1.0, %v435
    %v437 = vmul.f32 %v436, 2.0
    %v438 = vsub.f32 %v437, 1.0
    %v439 = vmul.f32 %v436, %v301
    %441 = vrot.lane.b32.xlu0 %v438, 64
    %v442 = vpop.permute.xlu0 %441
    %v444 = vmul.f32 %v436, %v442
    %446 = vrot.lane.b32.xlu0 %v444, 32
    %v447 = vpop.permute.xlu0 %446
    %v449 = vadd.f32 %v439, %v447
    %v450 = vtanh.pop %v449
    %452 = vrot.lane.b32.xlu0 %v450, 64
    %v453 = vpop.permute.xlu0 %452
    %v455 = vmul.f32 %v436, %v453
    %456 = vmatpush.msra.mxu0 0.0
    %457 = vmatpush.msra.mxu0 0.0
    %458 = vmatpush.msra.mxu0 0.0
    %459 = vmatpush.msra.mxu0 0.0
    %460 = vmatpush.msra.mxu0 0.0
    %461 = vmatpush.msra.mxu0 0.0
    %462 = vmatpush.msra.mxu0 0.0
    %463 = vmatpush.msra.mxu0 0.0
    %464 = vmatpush.msra.mxu0 0.0
    %465 = vmatpush.msra.mxu0 0.0
    %466 = vmatpush.msra.mxu0 0.0
    %467 = vmatpush.msra.mxu0 0.0
    %468 = vmatpush.msra.mxu0 %v145
    %469 = vmatpush.msra.mxu0 %v144
    %470 = vmatpush.msra.mxu0 %v143
    %471 = vmatpush.msra.mxu0 %v142
    %472 = vmatmul.f32.gmra.mxu0 %v395
    %v473 = vpop.f32.mrf.mxu0
    %v474 = vadd.f32 0.0, %v473
    %475 = vdwg.mxu0
    %v476 = vadd.f32 %v125, %v474
    %v477 = vxor.u32 %v476, 2147483648
    %v478 = vmul.f32 %v477, 1.442695
    %v479 = vpow.pop %v478
    %v480 = vadd.f32 %v479, 1.0
    %v481 = vrcp.pop %v480
    %v482 = vmul.f32 %v480, %v481
    %v483 = vsub.f32 1.0, %v482
    %v484 = vmul.f32 %v481, %v483
    %v485 = vadd.f32 %v481, %v484
    %vm486 = vweird.f32 %v480
    %vm487 = vweird.f32 %v481
    %vm488 = vmor %vm486, %vm487
    %v489 = vsel %vm488, %v481, %v485
    %v490 = vand.u32 2147483647, %v480
    %vm491 = vcmp.eq.f32.partialorder %v490, 8.507059e+37
    %v492 = vand.u32 %v480, 2147483648
    %v493 = vor.u32 1.1754944e-38, %v492
    %v494 = vsel %vm491, %v493, %v489
    %v495 = vmul.f32 1.0, %v494
    %v496 = vmul.f32 %v495, 2.0
    %v497 = vsub.f32 %v496, 1.0
    %v498 = vmul.f32 %v495, %v360
    %500 = vrot.lane.b32.xlu0 %v497, 64
    %v501 = vpop.permute.xlu0 %500
    %v503 = vmul.f32 %v495, %v501
    %505 = vrot.lane.b32.xlu0 %v503, 32
    %v506 = vpop.permute.xlu0 %505
    %v508 = vadd.f32 %v498, %v506
    %v509 = vtanh.pop %v508
    %511 = vrot.lane.b32.xlu0 %v509, 64
    %v512 = vpop.permute.xlu0 %511
    %v514 = vmul.f32 %v495, %v512
    %516 = vrot.lane.b32.xlu0 %v455, 32
    %v517 = vpop.permute.xlu0 %516
    %v518 = vsel %vm160, %v517, 0
    %520 = vmatpush.msra.mxu0 0.0
    %521 = vmatpush.msra.mxu0 0.0
    %522 = vmatpush.msra.mxu0 0.0
    %523 = vmatpush.msra.mxu0 0.0
    %524 = vmatpush.msra.mxu0 0.0
    %525 = vmatpush.msra.mxu0 0.0
    %526 = vmatpush.msra.mxu0 0.0
    %527 = vmatpush.msra.mxu0 0.0
    %528 = vmatpush.msra.mxu0 0.0
    %529 = vmatpush.msra.mxu0 0.0
    %530 = vmatpush.msra.mxu0 0.0
    %531 = vmatpush.msra.mxu0 0.0
    %532 = vmatpush.msra.mxu0 %v153
    %533 = vmatpush.msra.mxu0 %v152
    %534 = vmatpush.msra.mxu0 %v151
    %535 = vmatpush.msra.mxu0 %v150
    %536 = vmatmul.f32.gmra.mxu0 %v518
    %v537 = vpop.f32.mrf.mxu0
    %v538 = vadd.f32 0.0, %v537
    %539 = vdwg.mxu0
    %541 = vrot.lane.b32.xlu0 %v514, 32
    %v542 = vpop.permute.xlu0 %541
    %v543 = vsel %vm160, %v542, 0
    %545 = vmatpush.msra.mxu0 0.0
    %546 = vmatpush.msra.mxu0 0.0
    %547 = vmatpush.msra.mxu0 0.0
    %548 = vmatpush.msra.mxu0 0.0
    %549 = vmatpush.msra.mxu0 0.0
    %550 = vmatpush.msra.mxu0 0.0
    %551 = vmatpush.msra.mxu0 0.0
    %552 = vmatpush.msra.mxu0 0.0
    %553 = vmatpush.msra.mxu0 0.0
    %554 = vmatpush.msra.mxu0 0.0
    %555 = vmatpush.msra.mxu0 0.0
    %556 = vmatpush.msra.mxu0 0.0
    %557 = vmatpush.msra.mxu0 %v149
    %558 = vmatpush.msra.mxu0 %v148
    %559 = vmatpush.msra.mxu0 %v147
    %560 = vmatpush.msra.mxu0 %v146
    %561 = vmatmul.f32.gmra.mxu0 %v543
    %v562 = vpop.f32.mrf.mxu0
    %v563 = vadd.f32 %v538, %v562
    %564 = vdwg.mxu0
    %v565 = vadd.f32 %v563, %v268
    %v566 = vxor.u32 %v565, 2147483648
    %v567 = vmul.f32 %v566, 1.442695
    %v568 = vpow.pop %v567
    %v569 = vadd.f32 %v568, 1.0
    %v570 = vrcp.pop %v569
    %v571 = vmul.f32 %v569, %v570
    %v572 = vsub.f32 1.0, %v571
    %v573 = vmul.f32 %v570, %v572
    %v574 = vadd.f32 %v570, %v573
    %vm575 = vweird.f32 %v569
    %vm576 = vweird.f32 %v570
    %vm577 = vmor %vm575, %vm576
    %v578 = vsel %vm577, %v570, %v574
    %v579 = vand.u32 2147483647, %v569
    %vm580 = vcmp.eq.f32.partialorder %v579, 8.507059e+37
    %v581 = vand.u32 %v569, 2147483648
    %v582 = vor.u32 1.1754944e-38, %v581
    %v583 = vsel %vm580, %v582, %v578
    %v584 = vmul.f32 1.0, %v583
    %v585 = vmul.f32 %v584, 2.0
    %v586 = vsub.f32 %v585, 1.0
    %v587 = vmul.f32 %v584, %v449
    %589 = vrot.lane.b32.xlu0 %v586, 64
    %v590 = vpop.permute.xlu0 %589
    %v592 = vmul.f32 %v584, %v590
    %594 = vrot.lane.b32.xlu0 %v592, 32
    %v595 = vpop.permute.xlu0 %594
    %v597 = vadd.f32 %v587, %v595
    %v598 = vtanh.pop %v597
    %600 = vrot.lane.b32.xlu0 %v598, 64
    %v601 = vpop.permute.xlu0 %600
    %v603 = vmul.f32 %v584, %v601
    %604 = vmatpush.msra.mxu0 0.0
    %605 = vmatpush.msra.mxu0 0.0
    %606 = vmatpush.msra.mxu0 0.0
    %607 = vmatpush.msra.mxu0 0.0
    %608 = vmatpush.msra.mxu0 0.0
    %609 = vmatpush.msra.mxu0 0.0
    %610 = vmatpush.msra.mxu0 0.0
    %611 = vmatpush.msra.mxu0 0.0
    %612 = vmatpush.msra.mxu0 0.0
    %613 = vmatpush.msra.mxu0 0.0
    %614 = vmatpush.msra.mxu0 0.0
    %615 = vmatpush.msra.mxu0 0.0
    %616 = vmatpush.msra.mxu0 %v145
    %617 = vmatpush.msra.mxu0 %v144
    %618 = vmatpush.msra.mxu0 %v143
    %619 = vmatpush.msra.mxu0 %v142
    %620 = vmatmul.f32.gmra.mxu0 %v543
    %v621 = vpop.f32.mrf.mxu0
    %v622 = vadd.f32 0.0, %v621
    %623 = vdwg.mxu0
    %v624 = vadd.f32 %v128, %v622
    %v625 = vxor.u32 %v624, 2147483648
    %v626 = vmul.f32 %v625, 1.442695
    %v627 = vpow.pop %v626
    %v628 = vadd.f32 %v627, 1.0
    %v629 = vrcp.pop %v628
    %v630 = vmul.f32 %v628, %v629
    %v631 = vsub.f32 1.0, %v630
    %v632 = vmul.f32 %v629, %v631
    %v633 = vadd.f32 %v629, %v632
    %vm634 = vweird.f32 %v628
    %vm635 = vweird.f32 %v629
    %vm636 = vmor %vm634, %vm635
    %v637 = vsel %vm636, %v629, %v633
    %v638 = vand.u32 2147483647, %v628
    %vm639 = vcmp.eq.f32.partialorder %v638, 8.507059e+37
    %v640 = vand.u32 %v628, 2147483648
    %v641 = vor.u32 1.1754944e-38, %v640
    %v642 = vsel %vm639, %v641, %v637
    %v643 = vmul.f32 1.0, %v642
    %v644 = vmul.f32 %v643, 2.0
    %v645 = vsub.f32 %v644, 1.0
    %v646 = vmul.f32 %v643, %v508
    %648 = vrot.lane.b32.xlu0 %v645, 64
    %v649 = vpop.permute.xlu0 %648
    %v651 = vmul.f32 %v643, %v649
    %653 = vrot.lane.b32.xlu0 %v651, 32
    %v654 = vpop.permute.xlu0 %653
    %v656 = vadd.f32 %v646, %v654
    %v657 = vtanh.pop %v656
    %659 = vrot.lane.b32.xlu0 %v657, 64
    %v660 = vpop.permute.xlu0 %659
    %v662 = vmul.f32 %v643, %v660
    %664 = vrot.lane.b32.xlu0 %v603, 32
    %v665 = vpop.permute.xlu0 %664
    %v666 = vsel %vm160, %v665, 0
    %668 = vmatpush.msra.mxu0 0.0
    %669 = vmatpush.msra.mxu0 0.0
    %670 = vmatpush.msra.mxu0 0.0
    %671 = vmatpush.msra.mxu0 0.0
    %672 = vmatpush.msra.mxu0 0.0
    %673 = vmatpush.msra.mxu0 0.0
    %674 = vmatpush.msra.mxu0 0.0
    %675 = vmatpush.msra.mxu0 0.0
    %676 = vmatpush.msra.mxu0 0.0
    %677 = vmatpush.msra.mxu0 0.0
    %678 = vmatpush.msra.mxu0 0.0
    %679 = vmatpush.msra.mxu0 0.0
    %680 = vmatpush.msra.mxu0 %v153
    %681 = vmatpush.msra.mxu0 %v152
    %682 = vmatpush.msra.mxu0 %v151
    %683 = vmatpush.msra.mxu0 %v150
    %684 = vmatmul.f32.gmra.mxu0 %v666
    %v685 = vpop.f32.mrf.mxu0
    %v686 = vadd.f32 0.0, %v685
    %687 = vdwg.mxu0
    %689 = vrot.lane.b32.xlu0 %v662, 32
    %v690 = vpop.permute.xlu0 %689
    %v691 = vsel %vm160, %v690, 0
    %693 = vmatpush.msra.mxu0 0.0
    %694 = vmatpush.msra.mxu0 0.0
    %695 = vmatpush.msra.mxu0 0.0
    %696 = vmatpush.msra.mxu0 0.0
    %697 = vmatpush.msra.mxu0 0.0
    %698 = vmatpush.msra.mxu0 0.0
    %699 = vmatpush.msra.mxu0 0.0
    %700 = vmatpush.msra.mxu0 0.0
    %701 = vmatpush.msra.mxu0 0.0
    %702 = vmatpush.msra.mxu0 0.0
    %703 = vmatpush.msra.mxu0 0.0
    %704 = vmatpush.msra.mxu0 0.0
    %705 = vmatpush.msra.mxu0 %v149
    %706 = vmatpush.msra.mxu0 %v148
    %707 = vmatpush.msra.mxu0 %v147
    %708 = vmatpush.msra.mxu0 %v146
    %709 = vmatmul.f32.gmra.mxu0 %v691
    %v710 = vpop.f32.mrf.mxu0
    %v711 = vadd.f32 %v686, %v710
    %712 = vdwg.mxu0
    %v713 = vadd.f32 %v711, %v268
    %v714 = vxor.u32 %v713, 2147483648
    %v715 = vmul.f32 %v714, 1.442695
    %v716 = vpow.pop %v715
    %v717 = vadd.f32 %v716, 1.0
    %v718 = vrcp.pop %v717
    %v719 = vmul.f32 %v717, %v718
    %v720 = vsub.f32 1.0, %v719
    %v721 = vmul.f32 %v718, %v720
    %v722 = vadd.f32 %v718, %v721
    %vm723 = vweird.f32 %v717
    %vm724 = vweird.f32 %v718
    %vm725 = vmor %vm723, %vm724
    %v726 = vsel %vm725, %v718, %v722
    %v727 = vand.u32 2147483647, %v717
    %vm728 = vcmp.eq.f32.partialorder %v727, 8.507059e+37
    %v729 = vand.u32 %v717, 2147483648
    %v730 = vor.u32 1.1754944e-38, %v729
    %v731 = vsel %vm728, %v730, %v726
    %v732 = vmul.f32 1.0, %v731
    %v733 = vmul.f32 %v732, 2.0
    %v734 = vsub.f32 %v733, 1.0
    %v735 = vmul.f32 %v732, %v597
    %737 = vrot.lane.b32.xlu0 %v734, 64
    %v738 = vpop.permute.xlu0 %737
    %v740 = vmul.f32 %v732, %v738
    %742 = vrot.lane.b32.xlu0 %v740, 32
    %v743 = vpop.permute.xlu0 %742
    %v745 = vadd.f32 %v735, %v743
    %v746 = vtanh.pop %v745
    %748 = vrot.lane.b32.xlu0 %v746, 64
    %v749 = vpop.permute.xlu0 %748
    %v751 = vmul.f32 %v732, %v749
    %752 = vmatpush.msra.mxu0 0.0
    %753 = vmatpush.msra.mxu0 0.0
    %754 = vmatpush.msra.mxu0 0.0
    %755 = vmatpush.msra.mxu0 0.0
    %756 = vmatpush.msra.mxu0 0.0
    %757 = vmatpush.msra.mxu0 0.0
    %758 = vmatpush.msra.mxu0 0.0
    %759 = vmatpush.msra.mxu0 0.0
    %760 = vmatpush.msra.mxu0 0.0
    %761 = vmatpush.msra.mxu0 0.0
    %762 = vmatpush.msra.mxu0 0.0
    %763 = vmatpush.msra.mxu0 0.0
    %764 = vmatpush.msra.mxu0 %v145
    %765 = vmatpush.msra.mxu0 %v144
    %766 = vmatpush.msra.mxu0 %v143
    %767 = vmatpush.msra.mxu0 %v142
    %768 = vmatmul.f32.gmra.mxu0 %v691
    %v769 = vpop.f32.mrf.mxu0
    %v770 = vadd.f32 0.0, %v769
    %771 = vdwg.mxu0
    %v772 = vadd.f32 %v131, %v770
    %v773 = vxor.u32 %v772, 2147483648
    %v774 = vmul.f32 %v773, 1.442695
    %v775 = vpow.pop %v774
    %v776 = vadd.f32 %v775, 1.0
    %v777 = vrcp.pop %v776
    %v778 = vmul.f32 %v776, %v777
    %v779 = vsub.f32 1.0, %v778
    %v780 = vmul.f32 %v777, %v779
    %v781 = vadd.f32 %v777, %v780
    %vm782 = vweird.f32 %v776
    %vm783 = vweird.f32 %v777
    %vm784 = vmor %vm782, %vm783
    %v785 = vsel %vm784, %v777, %v781
    %v786 = vand.u32 2147483647, %v776
    %vm787 = vcmp.eq.f32.partialorder %v786, 8.507059e+37
    %v788 = vand.u32 %v776, 2147483648
    %v789 = vor.u32 1.1754944e-38, %v788
    %v790 = vsel %vm787, %v789, %v785
    %v791 = vmul.f32 1.0, %v790
    %v792 = vmul.f32 %v791, 2.0
    %v793 = vsub.f32 %v792, 1.0
    %v794 = vmul.f32 %v791, %v656
    %796 = vrot.lane.b32.xlu0 %v793, 64
    %v797 = vpop.permute.xlu0 %796
    %v799 = vmul.f32 %v791, %v797
    %801 = vrot.lane.b32.xlu0 %v799, 32
    %v802 = vpop.permute.xlu0 %801
    %v804 = vadd.f32 %v794, %v802
    %v805 = vtanh.pop %v804
    %807 = vrot.lane.b32.xlu0 %v805, 64
    %v808 = vpop.permute.xlu0 %807
    %v810 = vmul.f32 %v791, %v808
    %812 = vrot.lane.b32.xlu0 %v751, 32
    %v813 = vpop.permute.xlu0 %812
    %v814 = vsel %vm160, %v813, 0
    %816 = vmatpush.msra.mxu0 0.0
    %817 = vmatpush.msra.mxu0 0.0
    %818 = vmatpush.msra.mxu0 0.0
    %819 = vmatpush.msra.mxu0 0.0
    %820 = vmatpush.msra.mxu0 0.0
    %821 = vmatpush.msra.mxu0 0.0
    %822 = vmatpush.msra.mxu0 0.0
    %823 = vmatpush.msra.mxu0 0.0
    %824 = vmatpush.msra.mxu0 0.0
    %825 = vmatpush.msra.mxu0 0.0
    %826 = vmatpush.msra.mxu0 0.0
    %827 = vmatpush.msra.mxu0 0.0
    %828 = vmatpush.msra.mxu0 %v153
    %829 = vmatpush.msra.mxu0 %v152
    %830 = vmatpush.msra.mxu0 %v151
    %831 = vmatpush.msra.mxu0 %v150
    %832 = vmatmul.f32.gmra.mxu0 %v814
    %v833 = vpop.f32.mrf.mxu0
    %v834 = vadd.f32 0.0, %v833
    %835 = vdwg.mxu0
    %837 = vrot.lane.b32.xlu0 %v810, 32
    %v838 = vpop.permute.xlu0 %837
    %v839 = vsel %vm160, %v838, 0
    %841 = vmatpush.msra.mxu0 0.0
    %842 = vmatpush.msra.mxu0 0.0
    %843 = vmatpush.msra.mxu0 0.0
    %844 = vmatpush.msra.mxu0 0.0
    %845 = vmatpush.msra.mxu0 0.0
    %846 = vmatpush.msra.mxu0 0.0
    %847 = vmatpush.msra.mxu0 0.0
    %848 = vmatpush.msra.mxu0 0.0
    %849 = vmatpush.msra.mxu0 0.0
    %850 = vmatpush.msra.mxu0 0.0
    %851 = vmatpush.msra.mxu0 0.0
    %852 = vmatpush.msra.mxu0 0.0
    %853 = vmatpush.msra.mxu0 %v149
    %854 = vmatpush.msra.mxu0 %v148
    %855 = vmatpush.msra.mxu0 %v147
    %856 = vmatpush.msra.mxu0 %v146
    %857 = vmatmul.f32.gmra.mxu0 %v839
    %v858 = vpop.f32.mrf.mxu0
    %v859 = vadd.f32 %v834, %v858
    %860 = vdwg.mxu0
    %v861 = vadd.f32 %v859, %v268
    %v862 = vxor.u32 %v861, 2147483648
    %v863 = vmul.f32 %v862, 1.442695
    %v864 = vpow.pop %v863
    %v865 = vadd.f32 %v864, 1.0
    %v866 = vrcp.pop %v865
    %v867 = vmul.f32 %v865, %v866
    %v868 = vsub.f32 1.0, %v867
    %v869 = vmul.f32 %v866, %v868
    %v870 = vadd.f32 %v866, %v869
    %vm871 = vweird.f32 %v865
    %vm872 = vweird.f32 %v866
    %vm873 = vmor %vm871, %vm872
    %v874 = vsel %vm873, %v866, %v870
    %v875 = vand.u32 2147483647, %v865
    %vm876 = vcmp.eq.f32.partialorder %v875, 8.507059e+37
    %v877 = vand.u32 %v865, 2147483648
    %v878 = vor.u32 1.1754944e-38, %v877
    %v879 = vsel %vm876, %v878, %v874
    %v880 = vmul.f32 1.0, %v879
    %v881 = vmul.f32 %v880, 2.0
    %v882 = vsub.f32 %v881, 1.0
    %v883 = vmul.f32 %v880, %v745
    %885 = vrot.lane.b32.xlu0 %v882, 64
    %v886 = vpop.permute.xlu0 %885
    %v888 = vmul.f32 %v880, %v886
    %890 = vrot.lane.b32.xlu0 %v888, 32
    %v891 = vpop.permute.xlu0 %890
    %v893 = vadd.f32 %v883, %v891
    %v894 = vtanh.pop %v893
    %896 = vrot.lane.b32.xlu0 %v894, 64
    %v897 = vpop.permute.xlu0 %896
    %v899 = vmul.f32 %v880, %v897
    %900 = vmatpush.msra.mxu0 0.0
    %901 = vmatpush.msra.mxu0 0.0
    %902 = vmatpush.msra.mxu0 0.0
    %903 = vmatpush.msra.mxu0 0.0
    %904 = vmatpush.msra.mxu0 0.0
    %905 = vmatpush.msra.mxu0 0.0
    %906 = vmatpush.msra.mxu0 0.0
    %907 = vmatpush.msra.mxu0 0.0
    %908 = vmatpush.msra.mxu0 0.0
    %909 = vmatpush.msra.mxu0 0.0
    %910 = vmatpush.msra.mxu0 0.0
    %911 = vmatpush.msra.mxu0 0.0
    %912 = vmatpush.msra.mxu0 %v145
    %913 = vmatpush.msra.mxu0 %v144
    %914 = vmatpush.msra.mxu0 %v143
    %915 = vmatpush.msra.mxu0 %v142
    %916 = vmatmul.f32.gmra.mxu0 %v839
    %v917 = vpop.f32.mrf.mxu0
    %v918 = vadd.f32 0.0, %v917
    %919 = vdwg.mxu0
    %v920 = vadd.f32 %v134, %v918
    %v921 = vxor.u32 %v920, 2147483648
    %v922 = vmul.f32 %v921, 1.442695
    %v923 = vpow.pop %v922
    %v924 = vadd.f32 %v923, 1.0
    %v925 = vrcp.pop %v924
    %v926 = vmul.f32 %v924, %v925
    %v927 = vsub.f32 1.0, %v926
    %v928 = vmul.f32 %v925, %v927
    %v929 = vadd.f32 %v925, %v928
    %vm930 = vweird.f32 %v924
    %vm931 = vweird.f32 %v925
    %vm932 = vmor %vm930, %vm931
    %v933 = vsel %vm932, %v925, %v929
    %v934 = vand.u32 2147483647, %v924
    %vm935 = vcmp.eq.f32.partialorder %v934, 8.507059e+37
    %v936 = vand.u32 %v924, 2147483648
    %v937 = vor.u32 1.1754944e-38, %v936
    %v938 = vsel %vm935, %v937, %v933
    %v939 = vmul.f32 1.0, %v938
    %v940 = vmul.f32 %v939, 2.0
    %v941 = vsub.f32 %v940, 1.0
    %v942 = vmul.f32 %v939, %v804
    %944 = vrot.lane.b32.xlu0 %v941, 64
    %v945 = vpop.permute.xlu0 %944
    %v947 = vmul.f32 %v939, %v945
    %949 = vrot.lane.b32.xlu0 %v947, 32
    %v950 = vpop.permute.xlu0 %949
    %v952 = vadd.f32 %v942, %v950
    %v953 = vtanh.pop %v952
    %955 = vrot.lane.b32.xlu0 %v953, 64
    %v956 = vpop.permute.xlu0 %955
    %v958 = vmul.f32 %v939, %v956
    %960 = vrot.lane.b32.xlu0 %v899, 32
    %v961 = vpop.permute.xlu0 %960
    %v962 = vsel %vm160, %v961, 0
    %964 = vmatpush.msra.mxu0 0.0
    %965 = vmatpush.msra.mxu0 0.0
    %966 = vmatpush.msra.mxu0 0.0
    %967 = vmatpush.msra.mxu0 0.0
    %968 = vmatpush.msra.mxu0 0.0
    %969 = vmatpush.msra.mxu0 0.0
    %970 = vmatpush.msra.mxu0 0.0
    %971 = vmatpush.msra.mxu0 0.0
    %972 = vmatpush.msra.mxu0 0.0
    %973 = vmatpush.msra.mxu0 0.0
    %974 = vmatpush.msra.mxu0 0.0
    %975 = vmatpush.msra.mxu0 0.0
    %976 = vmatpush.msra.mxu0 %v153
    %977 = vmatpush.msra.mxu0 %v152
    %978 = vmatpush.msra.mxu0 %v151
    %979 = vmatpush.msra.mxu0 %v150
    %980 = vmatmul.f32.gmra.mxu0 %v962
    %v981 = vpop.f32.mrf.mxu0
    %v982 = vadd.f32 0.0, %v981
    %983 = vdwg.mxu0
    %985 = vrot.lane.b32.xlu0 %v958, 32
    %v986 = vpop.permute.xlu0 %985
    %v987 = vsel %vm160, %v986, 0
    %989 = vmatpush.msra.mxu0 0.0
    %990 = vmatpush.msra.mxu0 0.0
    %991 = vmatpush.msra.mxu0 0.0
    %992 = vmatpush.msra.mxu0 0.0
    %993 = vmatpush.msra.mxu0 0.0
    %994 = vmatpush.msra.mxu0 0.0
    %995 = vmatpush.msra.mxu0 0.0
    %996 = vmatpush.msra.mxu0 0.0
    %997 = vmatpush.msra.mxu0 0.0
    %998 = vmatpush.msra.mxu0 0.0
    %999 = vmatpush.msra.mxu0 0.0
    %1000 = vmatpush.msra.mxu0 0.0
    %1001 = vmatpush.msra.mxu0 %v149
    %1002 = vmatpush.msra.mxu0 %v148
    %1003 = vmatpush.msra.mxu0 %v147
    %1004 = vmatpush.msra.mxu0 %v146
    %1005 = vmatmul.f32.gmra.mxu0 %v987
    %v1006 = vpop.f32.mrf.mxu0
    %v1007 = vadd.f32 %v982, %v1006
    %1008 = vdwg.mxu0
    %v1009 = vadd.f32 %v1007, %v268
    %v1010 = vxor.u32 %v1009, 2147483648
    %v1011 = vmul.f32 %v1010, 1.442695
    %v1012 = vpow.pop %v1011
    %v1013 = vadd.f32 %v1012, 1.0
    %v1014 = vrcp.pop %v1013
    %v1015 = vmul.f32 %v1013, %v1014
    %v1016 = vsub.f32 1.0, %v1015
    %v1017 = vmul.f32 %v1014, %v1016
    %v1018 = vadd.f32 %v1014, %v1017
    %vm1019 = vweird.f32 %v1013
    %vm1020 = vweird.f32 %v1014
    %vm1021 = vmor %vm1019, %vm1020
    %v1022 = vsel %vm1021, %v1014, %v1018
    %v1023 = vand.u32 2147483647, %v1013
    %vm1024 = vcmp.eq.f32.partialorder %v1023, 8.507059e+37
    %v1025 = vand.u32 %v1013, 2147483648
    %v1026 = vor.u32 1.1754944e-38, %v1025
    %v1027 = vsel %vm1024, %v1026, %v1022
    %v1028 = vmul.f32 1.0, %v1027
    %v1029 = vmul.f32 %v1028, 2.0
    %v1030 = vsub.f32 %v1029, 1.0
    %v1031 = vmul.f32 %v1028, %v893
    %1033 = vrot.lane.b32.xlu0 %v1030, 64
    %v1034 = vpop.permute.xlu0 %1033
    %v1036 = vmul.f32 %v1028, %v1034
    %1038 = vrot.lane.b32.xlu0 %v1036, 32
    %v1039 = vpop.permute.xlu0 %1038
    %v1041 = vadd.f32 %v1031, %v1039
    %v1042 = vtanh.pop %v1041
    %1044 = vrot.lane.b32.xlu0 %v1042, 64
    %v1045 = vpop.permute.xlu0 %1044
    %v1047 = vmul.f32 %v1028, %v1045
    %1048 = vmatpush.msra.mxu0 0.0
    %1049 = vmatpush.msra.mxu0 0.0
    %1050 = vmatpush.msra.mxu0 0.0
    %1051 = vmatpush.msra.mxu0 0.0
    %1052 = vmatpush.msra.mxu0 0.0
    %1053 = vmatpush.msra.mxu0 0.0
    %1054 = vmatpush.msra.mxu0 0.0
    %1055 = vmatpush.msra.mxu0 0.0
    %1056 = vmatpush.msra.mxu0 0.0
    %1057 = vmatpush.msra.mxu0 0.0
    %1058 = vmatpush.msra.mxu0 0.0
    %1059 = vmatpush.msra.mxu0 0.0
    %1060 = vmatpush.msra.mxu0 %v145
    %1061 = vmatpush.msra.mxu0 %v144
    %1062 = vmatpush.msra.mxu0 %v143
    %1063 = vmatpush.msra.mxu0 %v142
    %1064 = vmatmul.f32.gmra.mxu0 %v987
    %v1065 = vpop.f32.mrf.mxu0
    %v1066 = vadd.f32 0.0, %v1065
    %1067 = vdwg.mxu0
    %v1068 = vadd.f32 %v137, %v1066
    %v1069 = vxor.u32 %v1068, 2147483648
    %v1070 = vmul.f32 %v1069, 1.442695
    %v1071 = vpow.pop %v1070
    %v1072 = vadd.f32 %v1071, 1.0
    %v1073 = vrcp.pop %v1072
    %v1074 = vmul.f32 %v1072, %v1073
    %v1075 = vsub.f32 1.0, %v1074
    %v1076 = vmul.f32 %v1073, %v1075
    %v1077 = vadd.f32 %v1073, %v1076
    %vm1078 = vweird.f32 %v1072
    %vm1079 = vweird.f32 %v1073
    %vm1080 = vmor %vm1078, %vm1079
    %v1081 = vsel %vm1080, %v1073, %v1077
    %v1082 = vand.u32 2147483647, %v1072
    %vm1083 = vcmp.eq.f32.partialorder %v1082, 8.507059e+37
    %v1084 = vand.u32 %v1072, 2147483648
    %v1085 = vor.u32 1.1754944e-38, %v1084
    %v1086 = vsel %vm1083, %v1085, %v1081
    %v1087 = vmul.f32 1.0, %v1086
    %v1088 = vmul.f32 %v1087, 2.0
    %v1089 = vsub.f32 %v1088, 1.0
    %v1090 = vmul.f32 %v1087, %v952
    %1092 = vrot.lane.b32.xlu0 %v1089, 64
    %v1093 = vpop.permute.xlu0 %1092
    %v1095 = vmul.f32 %v1087, %v1093
    %1097 = vrot.lane.b32.xlu0 %v1095, 32
    %v1098 = vpop.permute.xlu0 %1097
    %v1100 = vadd.f32 %v1090, %v1098
    %v1101 = vtanh.pop %v1100
    %1103 = vrot.lane.b32.xlu0 %v1101, 64
    %v1104 = vpop.permute.xlu0 %1103
    %v1106 = vmul.f32 %v1087, %v1104
    %1108 = vrot.lane.b32.xlu0 %v1047, 32
    %v1109 = vpop.permute.xlu0 %1108
    %v1110 = vsel %vm160, %v1109, 0
    %1112 = vmatpush.msra.mxu0 0.0
    %1113 = vmatpush.msra.mxu0 0.0
    %1114 = vmatpush.msra.mxu0 0.0
    %1115 = vmatpush.msra.mxu0 0.0
    %1116 = vmatpush.msra.mxu0 0.0
    %1117 = vmatpush.msra.mxu0 0.0
    %1118 = vmatpush.msra.mxu0 0.0
    %1119 = vmatpush.msra.mxu0 0.0
    %1120 = vmatpush.msra.mxu0 0.0
    %1121 = vmatpush.msra.mxu0 0.0
    %1122 = vmatpush.msra.mxu0 0.0
    %1123 = vmatpush.msra.mxu0 0.0
    %1124 = vmatpush.msra.mxu0 %v153
    %1125 = vmatpush.msra.mxu0 %v152
    %1126 = vmatpush.msra.mxu0 %v151
    %1127 = vmatpush.msra.mxu0 %v150
    %1128 = vmatmul.f32.gmra.mxu0 %v1110
    %v1129 = vpop.f32.mrf.mxu0
    %v1130 = vadd.f32 0.0, %v1129
    %1131 = vdwg.mxu0
    %1133 = vrot.lane.b32.xlu0 %v1106, 32
    %v1134 = vpop.permute.xlu0 %1133
    %v1135 = vsel %vm160, %v1134, 0
    %1137 = vmatpush.msra.mxu0 0.0
    %1138 = vmatpush.msra.mxu0 0.0
    %1139 = vmatpush.msra.mxu0 0.0
    %1140 = vmatpush.msra.mxu0 0.0
    %1141 = vmatpush.msra.mxu0 0.0
    %1142 = vmatpush.msra.mxu0 0.0
    %1143 = vmatpush.msra.mxu0 0.0
    %1144 = vmatpush.msra.mxu0 0.0
    %1145 = vmatpush.msra.mxu0 0.0
    %1146 = vmatpush.msra.mxu0 0.0
    %1147 = vmatpush.msra.mxu0 0.0
    %1148 = vmatpush.msra.mxu0 0.0
    %1149 = vmatpush.msra.mxu0 %v149
    %1150 = vmatpush.msra.mxu0 %v148
    %1151 = vmatpush.msra.mxu0 %v147
    %1152 = vmatpush.msra.mxu0 %v146
    %1153 = vmatmul.f32.gmra.mxu0 %v1135
    %v1154 = vpop.f32.mrf.mxu0
    %v1155 = vadd.f32 %v1130, %v1154
    %1156 = vdwg.mxu0
    %v1157 = vadd.f32 %v1155, %v268
    %v1158 = vxor.u32 %v1157, 2147483648
    %v1159 = vmul.f32 %v1158, 1.442695
    %v1160 = vpow.pop %v1159
    %v1161 = vadd.f32 %v1160, 1.0
    %v1162 = vrcp.pop %v1161
    %v1163 = vmul.f32 %v1161, %v1162
    %v1164 = vsub.f32 1.0, %v1163
    %v1165 = vmul.f32 %v1162, %v1164
    %v1166 = vadd.f32 %v1162, %v1165
    %vm1167 = vweird.f32 %v1161
    %vm1168 = vweird.f32 %v1162
    %vm1169 = vmor %vm1167, %vm1168
    %v1170 = vsel %vm1169, %v1162, %v1166
    %v1171 = vand.u32 2147483647, %v1161
    %vm1172 = vcmp.eq.f32.partialorder %v1171, 8.507059e+37
    %v1173 = vand.u32 %v1161, 2147483648
    %v1174 = vor.u32 1.1754944e-38, %v1173
    %v1175 = vsel %vm1172, %v1174, %v1170
    %v1176 = vmul.f32 1.0, %v1175
    %v1177 = vmul.f32 %v1176, 2.0
    %v1178 = vsub.f32 %v1177, 1.0
    %v1179 = vmul.f32 %v1176, %v1041
    %1181 = vrot.lane.b32.xlu0 %v1178, 64
    %v1182 = vpop.permute.xlu0 %1181
    %v1184 = vmul.f32 %v1176, %v1182
    %1186 = vrot.lane.b32.xlu0 %v1184, 32
    %v1187 = vpop.permute.xlu0 %1186
    %v1189 = vadd.f32 %v1179, %v1187
    %v1190 = vtanh.pop %v1189
    %1192 = vrot.lane.b32.xlu0 %v1190, 64
    %v1193 = vpop.permute.xlu0 %1192
    %v1195 = vmul.f32 %v1176, %v1193
    %1196 = vmatpush.msra.mxu0 0.0
    %1197 = vmatpush.msra.mxu0 0.0
    %1198 = vmatpush.msra.mxu0 0.0
    %1199 = vmatpush.msra.mxu0 0.0
    %1200 = vmatpush.msra.mxu0 0.0
    %1201 = vmatpush.msra.mxu0 0.0
    %1202 = vmatpush.msra.mxu0 0.0
    %1203 = vmatpush.msra.mxu0 0.0
    %1204 = vmatpush.msra.mxu0 0.0
    %1205 = vmatpush.msra.mxu0 0.0
    %1206 = vmatpush.msra.mxu0 0.0
    %1207 = vmatpush.msra.mxu0 0.0
    %1208 = vmatpush.msra.mxu0 %v145
    %1209 = vmatpush.msra.mxu0 %v144
    %1210 = vmatpush.msra.mxu0 %v143
    %1211 = vmatpush.msra.mxu0 %v142
    %1212 = vmatmul.f32.gmra.mxu0 %v1135
    %v1213 = vpop.f32.mrf.mxu0
    %v1214 = vadd.f32 0.0, %v1213
    %1215 = vdwg.mxu0
    %v1216 = vadd.f32 %v140, %v1214
    %v1217 = vxor.u32 %v1216, 2147483648
    %v1218 = vmul.f32 %v1217, 1.442695
    %v1219 = vpow.pop %v1218
    %v1220 = vadd.f32 %v1219, 1.0
    %v1221 = vrcp.pop %v1220
    %v1222 = vmul.f32 %v1220, %v1221
    %v1223 = vsub.f32 1.0, %v1222
    %v1224 = vmul.f32 %v1221, %v1223
    %v1225 = vadd.f32 %v1221, %v1224
    %vm1226 = vweird.f32 %v1220
    %vm1227 = vweird.f32 %v1221
    %vm1228 = vmor %vm1226, %vm1227
    %v1229 = vsel %vm1228, %v1221, %v1225
    %v1230 = vand.u32 2147483647, %v1220
    %vm1231 = vcmp.eq.f32.partialorder %v1230, 8.507059e+37
    %v1232 = vand.u32 %v1220, 2147483648
    %v1233 = vor.u32 1.1754944e-38, %v1232
    %v1234 = vsel %vm1231, %v1233, %v1229
    %v1235 = vmul.f32 1.0, %v1234
    %v1236 = vmul.f32 %v1235, 2.0
    %v1237 = vsub.f32 %v1236, 1.0
    %v1238 = vmul.f32 %v1235, %v1100
    %1240 = vrot.lane.b32.xlu0 %v1237, 64
    %v1241 = vpop.permute.xlu0 %1240
    %v1243 = vmul.f32 %v1235, %v1241
    %1245 = vrot.lane.b32.xlu0 %v1243, 32
    %v1246 = vpop.permute.xlu0 %1245
    %v1248 = vadd.f32 %v1238, %v1246
    %v1249 = vtanh.pop %v1248
    %1251 = vrot.lane.b32.xlu0 %v1249, 64
    %v1252 = vpop.permute.xlu0 %1251
    %v1254 = vmul.f32 %v1235, %v1252
    %1256 = vrot.lane.b32.xlu0 %v1195, 32
    %v1257 = vpop.permute.xlu0 %1256
    %v1258 = vsel %vm160, %v1257, 0
    %1260 = vmatpush.msra.mxu0 0.0
    %1261 = vmatpush.msra.mxu0 0.0
    %1262 = vmatpush.msra.mxu0 0.0
    %1263 = vmatpush.msra.mxu0 0.0
    %1264 = vmatpush.msra.mxu0 0.0
    %1265 = vmatpush.msra.mxu0 0.0
    %1266 = vmatpush.msra.mxu0 0.0
    %1267 = vmatpush.msra.mxu0 0.0
    %1268 = vmatpush.msra.mxu0 0.0
    %1269 = vmatpush.msra.mxu0 0.0
    %1270 = vmatpush.msra.mxu0 0.0
    %1271 = vmatpush.msra.mxu0 0.0
    %1272 = vmatpush.msra.mxu0 %v153
    %1273 = vmatpush.msra.mxu0 %v152
    %1274 = vmatpush.msra.mxu0 %v151
    %1275 = vmatpush.msra.mxu0 %v150
    %1276 = vmatmul.f32.gmra.mxu0 %v1258
    %v1277 = vpop.f32.mrf.mxu0
    %v1278 = vadd.f32 0.0, %v1277
    %1279 = vdwg.mxu0
    %1281 = vrot.lane.b32.xlu0 %v1254, 32
    %v1282 = vpop.permute.xlu0 %1281
    %v1283 = vsel %vm160, %v1282, 0
    %1285 = vmatpush.msra.mxu0 0.0
    %1286 = vmatpush.msra.mxu0 0.0
    %1287 = vmatpush.msra.mxu0 0.0
    %1288 = vmatpush.msra.mxu0 0.0
    %1289 = vmatpush.msra.mxu0 0.0
    %1290 = vmatpush.msra.mxu0 0.0
    %1291 = vmatpush.msra.mxu0 0.0
    %1292 = vmatpush.msra.mxu0 0.0
    %1293 = vmatpush.msra.mxu0 0.0
    %1294 = vmatpush.msra.mxu0 0.0
    %1295 = vmatpush.msra.mxu0 0.0
    %1296 = vmatpush.msra.mxu0 0.0
    %1297 = vmatpush.msra.mxu0 %v149
    %1298 = vmatpush.msra.mxu0 %v148
    %1299 = vmatpush.msra.mxu0 %v147
    %1300 = vmatpush.msra.mxu0 %v146
    %1301 = vmatmul.f32.gmra.mxu0 %v1283
    %v1302 = vpop.f32.mrf.mxu0
    %v1303 = vadd.f32 %v1278, %v1302
    %1304 = vdwg.mxu0
    %v1305 = vadd.f32 %v1303, %v268
    %v1306 = vxor.u32 %v1305, 2147483648
    %v1307 = vmul.f32 %v1306, 1.442695
    %v1308 = vpow.pop %v1307
    %v1309 = vadd.f32 %v1308, 1.0
    %v1310 = vrcp.pop %v1309
    %v1311 = vmul.f32 %v1309, %v1310
    %v1312 = vsub.f32 1.0, %v1311
    %v1313 = vmul.f32 %v1310, %v1312
    %v1314 = vadd.f32 %v1310, %v1313
    %vm1315 = vweird.f32 %v1309
    %vm1316 = vweird.f32 %v1310
    %vm1317 = vmor %vm1315, %vm1316
    %v1318 = vsel %vm1317, %v1310, %v1314
    %v1319 = vand.u32 2147483647, %v1309
    %vm1320 = vcmp.eq.f32.partialorder %v1319, 8.507059e+37
    %v1321 = vand.u32 %v1309, 2147483648
    %v1322 = vor.u32 1.1754944e-38, %v1321
    %v1323 = vsel %vm1320, %v1322, %v1318
    %v1324 = vmul.f32 1.0, %v1323
    %v1325 = vmul.f32 %v1324, 2.0
    %v1326 = vsub.f32 %v1325, 1.0
    %v1327 = vmul.f32 %v1324, %v1189
    %1329 = vrot.lane.b32.xlu0 %v1326, 64
    %v1330 = vpop.permute.xlu0 %1329
    %v1332 = vmul.f32 %v1324, %v1330
    %1334 = vrot.lane.b32.xlu0 %v1332, 32
    %v1335 = vpop.permute.xlu0 %1334
    %v1337 = vadd.f32 %v1327, %v1335
    %v1338 = vtanh.pop %v1337
    %1340 = vrot.lane.b32.xlu0 %v1338, 64
    %v1341 = vpop.permute.xlu0 %1340
    %v1343 = vmul.f32 %v1324, %v1341
    %v1344 = vperm.slane %v159, 0
    %1346 = vrot.lane.b32.xlu0 %v1343, 32
    %v1347 = vpop.permute.xlu0 %1346
    %v1348 = vsel %vm160, %v1347, 0
    %1350 = vmatpush.msra.mxu0 0.0
    %1351 = vmatpush.msra.mxu0 0.0
    %1352 = vmatpush.msra.mxu0 0.0
    %1353 = vmatpush.msra.mxu0 0.0
    %1354 = vmatpush.msra.mxu0 0.0
    %1355 = vmatpush.msra.mxu0 0.0
    %1356 = vmatpush.msra.mxu0 0.0
    %1357 = vmatpush.msra.mxu0 0.0
    %1358 = vmatpush.msra.mxu0 0.0
    %1359 = vmatpush.msra.mxu0 0.0
    %1360 = vmatpush.msra.mxu0 0.0
    %1361 = vmatpush.msra.mxu0 0.0
    %1362 = vmatpush.msra.mxu0 %v158
    %1363 = vmatpush.msra.mxu0 %v157
    %1364 = vmatpush.msra.mxu0 %v156
    %1365 = vmatpush.msra.mxu0 %v155
    %1366 = vmatmul.f32.gmra.mxu0 %v1348
    %v1367 = vpop.f32.mrf.mxu0
    %v1368 = vadd.f32 %v1344, %v1367
    %1369 = vdwg.mxu0
    %1370 = vst [vmem:[%s2] sm:$0xff] %v1368
    // Predicated region
    $region14: #{forward.1} parent=1 // pred_check
      _
    $region15: #{forward.1} parent=1 // pred_check_branch
      %1372 = sbr.rel (0) target = $region17
    $region16: #{forward.1} parent=1 // pred_region
      _
    $region17: #{forward.1} parent=1 // pred_fallthru
      _
    // Predicated region
    $region18: #{forward.1} parent=1 // pred_check
      _
    $region19: #{forward.1} parent=1 // pred_check_branch
      %1374 = sbr.rel (0) target = $region21
    $region20: #{forward.1} parent=1 // pred_region
      _
    $region21: #{forward.1} parent=1 // pred_fallthru
      _
    %1375 = vsyncpa [#allocation3], 1

</llo_original>
